<compile_context>
chip_gen: v7x
topology: tpu7x:2x2x1
jax: 0.10.0
libtpu: 0.0.40
codegen_flags: <defaults>
</compile_context>

<pallas_src>
import functools

import jax
import jax.numpy as jnp
from jax import lax
from jax.experimental import pallas as pl
from jax.experimental.pallas import tpu as pltpu


def _layernorm(x, gamma, beta, eps=1e-5):
    mean = jnp.mean(x, axis=-1, keepdims=True)
    var = jnp.mean(jnp.square(x - mean), axis=-1, keepdims=True)
    return (x - mean) * lax.rsqrt(var + eps) * gamma + beta


# ---------------------------------------------------------------------------
# Fused encoder-layers kernel: grid over layers, activation resident in the
# (constant-index) output block, weights streamed per layer.
# ---------------------------------------------------------------------------
def fused_layers_kernel(h0_ref, wqkv_ref, wo_ref, wl1_ref, vecs_ref,
                        o_ref, ctx_ref, *, n_heads):
    layer = pl.program_id(0)

    # Grid step 0: seed the VMEM-resident activation.  The output block has a
    # constant index map, so it stays in VMEM across all layers and is only
    # written back to HBM once, after the last layer.
    @pl.when(layer == 0)
    def _():
        o_ref[...] = h0_ref[...]

    x = o_ref[...]                              # [N, D] f32 resident activation
    n_rows, d = x.shape
    d_k = d // n_heads
    x_bf = x.astype(jnp.bfloat16)               # bf16 MXU operands

    # ---- Multi-head self-attention --------------------------------------
    # NOTE: the PyTorch `context.transpose(1, 2)` is interpreted as the
    # standard head/token transpose (heads concatenated per row).
    # Fused full-width QKV projection: one [N, D] x [D, 3D] MXU matmul.
    qkv = jnp.dot(x_bf, wqkv_ref[0], preferred_element_type=jnp.float32)  # [N, 3D] f32
    q = qkv[:, :d]                              # 1/sqrt(d_k) folded into W_Q cols
    k = qkv[:, d:2 * d]
    v = qkv[:, 2 * d:]

    # Per-head scores / context.  These contractions are intrinsically d_k-
    # and N-sized; only the tiny [N,N]/[N,d_k] matmuls stay per head.  Head
    # contexts are concatenated into adjacent lane blocks of ctx_ref so ONE
    # full-width output projection consumes them.
    for h in range(n_heads):                    # static unroll, tiny live ranges
        lo, hi = h * d_k, (h + 1) * d_k
        qh = q[:, lo:hi].astype(jnp.bfloat16)
        kh = k[:, lo:hi].astype(jnp.bfloat16)
        vh = v[:, lo:hi].astype(jnp.bfloat16)
        # Q K^T / sqrt(d_k) without materializing a transpose.
        s = lax.dot_general(qh, kh, (((1,), (1,)), ((), ())),
                            preferred_element_type=jnp.float32)          # [N, N]
        s = s - jnp.max(s, axis=-1, keepdims=True)                       # f32 softmax
        p = jnp.exp(s)
        p = p * pl.reciprocal(jnp.sum(p, axis=-1, keepdims=True), approx=True)
        ctx_ref[:, lo:hi] = jnp.dot(p.astype(jnp.bfloat16), vh,
                                    preferred_element_type=jnp.float32)  # [N, d_k]

    # Single full-width output projection of the concatenated head contexts.
    attn = jnp.dot(ctx_ref[...].astype(jnp.bfloat16), wo_ref[0],
                   preferred_element_type=jnp.float32)                   # [N, D]

    # ---- Add & Norm 1 / Feed-forward / Add & Norm 2 (f32 elementwise) ----
    vecs = vecs_ref[0]                          # [8, D] f32: g1,b1,bl1,g2,b2,pad
    g1, b1 = vecs[0:1, :], vecs[1:2, :]
    bl1 = vecs[2:3, :]
    g2, b2 = vecs[3:4, :], vecs[4:5, :]

    h1 = _layernorm(attn + x, g1, b1)
    ff = jnp.dot(h1.astype(jnp.bfloat16), wl1_ref[0],
                 preferred_element_type=jnp.float32) + bl1
    h2 = _layernorm(ff + h1, g2, b2)

    o_ref[...] = h2                             # single activation store / layer


def encoder_forward(x, packed, n_heads):
    # Stage 1 (outside the fused kernel, per review): input Linear ->
    # Dropout(identity in eval) -> ReLU as a plain XLA GEMM, so x / W_in are
    # not held resident in VMEM for all L grid steps.
    h0 = jax.nn.relu(jnp.dot(x, packed["w_in_t"]) + packed["b_in"])
    h0 = h0.astype(jnp.float32)

    L, d, d3 = packed["wqkv"].shape
    assert d3 == 3 * d and d % n_heads == 0
    n = h0.shape[0]

    def rep(shape):          # constant block: loaded once, VMEM resident
        return pl.BlockSpec(shape, lambda l: (0,) * len(shape))

    def per_layer(shape):    # leading axis indexed by the layer grid step
        return pl.BlockSpec((1,) + tuple(shape[1:]),
                            lambda l: (l,) + (0,) * (len(shape) - 1))

    in_specs = [
        rep((n, d)),                         # h0 activation seed
        per_layer(packed["wqkv"].shape),     # [L, D, 3D] bf16 (fused QKV, [in,out])
        per_layer(packed["wo"].shape),       # [L, D, D]  bf16
        per_layer(packed["wl1"].shape),      # [L, D, D]  bf16
        per_layer(packed["vecs"].shape),     # [L, 8, D]  f32 (g1,b1,bl1,g2,b2)
    ]
    out_specs = pl.BlockSpec((n, d), lambda l: (0, 0))

    # Explicit VMEM budget sized from the real per-step working set
    # (double-buffered per-layer weights + resident activation/ctx), with a
    # floor/ceiling so it is safe across v5e/v6e/v7x.
    per_step_bytes = (d * 3 * d + 2 * d * d) * 2 + 8 * d * 4 + n * d * 4
    resident_bytes = 2 * n * d * 4
    vmem_limit = int(min(max(4 * (2 * per_step_bytes + resident_bytes),
                             16 << 20), 64 << 20))

    kernel = functools.partial(fused_layers_kernel, n_heads=n_heads)
    return pl.pallas_call(
        kernel,
        out_shape=jax.ShapeDtypeStruct((n, d), jnp.float32),
        grid_spec=pltpu.PrefetchScalarGridSpec(
            num_scalar_prefetch=0,
            grid=(L,),
            in_specs=in_specs,
            out_specs=out_specs,
            scratch_shapes=[pltpu.VMEM((n, d), jnp.float32)],  # head-concat ctx
        ),
        compiler_params=pltpu.CompilerParams(
            dimension_semantics=("arbitrary",),   # layers are sequential
            vmem_limit_bytes=vmem_limit),
    )(h0, packed["wqkv"], packed["wo"], packed["wl1"], packed["vecs"])


# ---------------------------------------------------------------------------
# Parameter construction (PyTorch layout) and one-time host-side packing.
# ---------------------------------------------------------------------------
def init_encoder_params(key, vector_size, dim_out, n_layers, n_heads):
    k = jax.random.split(key, 2 + n_layers)
    scale = 0.05
    params = {
        "w_in": scale * jax.random.normal(k[0], (dim_out, vector_size), jnp.float32),
        "b_in": 0.01 * jax.random.normal(k[1], (dim_out,), jnp.float32),
        "layers": [],
    }
    for i in range(n_layers):
        kk = jax.random.split(k[2 + i], 10)
        params["layers"].append({
            "wq": scale * jax.random.normal(kk[0], (dim_out, dim_out), jnp.float32),
            "wk": scale * jax.random.normal(kk[1], (dim_out, dim_out), jnp.float32),
            "wv": scale * jax.random.normal(kk[2], (dim_out, dim_out), jnp.float32),
            "wfc": scale * jax.random.normal(kk[3], (dim_out, dim_out), jnp.float32),
            "g1": 1.0 + 0.1 * jax.random.normal(kk[4], (dim_out,), jnp.float32),
            "b1": 0.05 * jax.random.normal(kk[5], (dim_out,), jnp.float32),
            "wl1": scale * jax.random.normal(kk[6], (dim_out, dim_out), jnp.float32),
            "bl1": 0.01 * jax.random.normal(kk[7], (dim_out,), jnp.float32),
            "g2": 1.0 + 0.1 * jax.random.normal(kk[8], (dim_out,), jnp.float32),
            "b2": 0.05 * jax.random.normal(kk[9], (dim_out,), jnp.float32),
        })
    return params


def pack_encoder_params(params, n_heads):
    """Stack per-layer weights, pre-transpose to [in, out], fuse QKV, fold
    1/sqrt(d_k) into W_Q, cast matmul weights to bf16, pack small vectors."""
    layers = params["layers"]
    L = len(layers)
    d = params["w_in"].shape[0]
    d_k = d // n_heads
    stack = lambda name: jnp.stack([lp[name] for lp in layers], axis=0)

    wq_t = jnp.transpose(stack("wq"), (0, 2, 1)) / jnp.sqrt(jnp.float32(d_k))
    wk_t = jnp.transpose(stack("wk"), (0, 2, 1))
    wv_t = jnp.transpose(stack("wv"), (0, 2, 1))
    wqkv = jnp.concatenate([wq_t, wk_t, wv_t], axis=-1).astype(jnp.bfloat16)

    vecs = jnp.stack([stack("g1"), stack("b1"), stack("bl1"),
                      stack("g2"), stack("b2")], axis=1)          # [L, 5, D]
    vecs = jnp.pad(vecs, ((0, 0), (0, 3), (0, 0)))                # [L, 8, D]

    return {
        "w_in_t": params["w_in"].T,                               # [Din, D] f32
        "b_in": params["b_in"],                                   # [D] f32
        "wqkv": wqkv,                                             # [L, D, 3D] bf16
        "wo": jnp.transpose(stack("wfc"), (0, 2, 1)).astype(jnp.bfloat16),
        "wl1": jnp.transpose(stack("wl1"), (0, 2, 1)).astype(jnp.bfloat16),
        "vecs": vecs.astype(jnp.float32),                         # [L, 8, D] f32
    }


# ---------------------------------------------------------------------------
# Pure-JAX f32 reference (for correctness check)
# ---------------------------------------------------------------------------
def _ref_layer(x, p, n_heads):
    n, d = x.shape
    d_k = d // n_heads
    q = (x @ p["wq"].T).reshape(n, n_heads, d_k).transpose(1, 0, 2)
    k = (x @ p["wk"].T).reshape(n, n_heads, d_k).transpose(1, 0, 2)
    v = (x @ p["wv"].T).reshape(n, n_heads, d_k).transpose(1, 0, 2)
    s = jnp.einsum("hqd,hkd->hqk", q, k) / jnp.sqrt(jnp.float32(d_k))
    a = jax.nn.softmax(s, axis=-1)
    ctx = jnp.einsum("hqk,hkd->hqd", a, v).transpose(1, 0, 2).reshape(n, d)
    attn_out = ctx @ p["wfc"].T
    h1 = _layernorm(attn_out + x, p["g1"], p["b1"])
    ff = h1 @ p["wl1"].T + p["bl1"]
    return _layernorm(ff + h1, p["g2"], p["b2"])


def _ref_encoder(x, params, n_heads):
    h = jax.nn.relu(x @ params["w_in"].T + params["b_in"])
    for layer in params["layers"]:
        h = _ref_layer(h, layer, n_heads)
    return h


if __name__ == "__main__":
    N = 8               # rows (attention "sequence" length)
    VECTOR_SIZE = 64
    DIM_OUT = 128       # lane-dense hidden size (multiple of 128, perf review)
    N_LAYERS = 2
    N_HEADS = 4         # d_k = 32

    key = jax.random.PRNGKey(0)
    kx, kp = jax.random.split(key)
    x = jax.random.normal(kx, (N, VECTOR_SIZE), jnp.float32)
    params = init_encoder_params(kp, VECTOR_SIZE, DIM_OUT, N_LAYERS, N_HEADS)
    packed = pack_encoder_params(params, N_HEADS)

    fwd = jax.jit(functools.partial(encoder_forward, n_heads=N_HEADS))
    out = jax.block_until_ready(fwd(x, packed))
    ref = jax.block_until_ready(_ref_encoder(x, params, N_HEADS))

    assert out.shape == (N, DIM_OUT)
    max_err = float(jnp.max(jnp.abs(out - ref)))
    # bf16 MXU operands (per perf review) => looser parity vs the pure-f32
    # reference; a real bug would produce O(1) errors.
    assert jnp.allclose(out, ref, atol=5e-2, rtol=5e-2), \
        f"mismatch vs f32 reference (max abs err {max_err})"
    print("KERNEL_OK")
</pallas_src>

<mosaic_0001>
module attributes {stable_mosaic.version = 11 : i64} {
  func.func @fused_layers_kernel(%arg0: i32, %arg1: memref<8x128xf32, #tpu.memory_space<vmem>>, %arg2: memref<1x128x384xbf16, #tpu.memory_space<vmem>>, %arg3: memref<1x128x128xbf16, #tpu.memory_space<vmem>>, %arg4: memref<1x128x128xbf16, #tpu.memory_space<vmem>>, %arg5: memref<1x8x128xf32, #tpu.memory_space<vmem>>, %arg6: memref<8x128xf32, #tpu.memory_space<vmem>>, %arg7: memref<8x128xf32, #tpu.memory_space<vmem>>) attributes {dimension_semantics = [#tpu.dimension_semantics<arbitrary>], iteration_bounds = array<i64: 2>, scalar_prefetch = 0 : i64, scratch_operands = 1 : i64, tpu.core_type = #tpu.core_type<tc>, window_params = [{pipeline_mode = #tpu.pipeline_mode<synchronous>, transform_indices = @transform_0, window_bounds = array<i64: 8, 128>}, {transform_indices = @transform_1, window_bounds = array<i64: 1, 128, 384>}, {transform_indices = @transform_2, window_bounds = array<i64: 1, 128, 128>}, {transform_indices = @transform_3, window_bounds = array<i64: 1, 128, 128>}, {transform_indices = @transform_4, window_bounds = array<i64: 1, 8, 128>}, {pipeline_mode = #tpu.pipeline_mode<synchronous>, transform_indices = @transform_5, window_bounds = array<i64: 8, 128>}]} {
    %c0_i32 = arith.constant 0 : i32
    %0 = arith.cmpi eq, %arg0, %c0_i32 : i32
    %1 = arith.extui %0 : i1 to i32
    %c0_i32_0 = arith.constant 0 : i32
    %2 = arith.cmpi ne, %1, %c0_i32_0 : i32
    scf.if %2 {
      %c0_51 = arith.constant 0 : index
      %c0_52 = arith.constant 0 : index
      %156 = vector.load %arg1[%c0_51, %c0_52] : memref<8x128xf32, #tpu.memory_space<vmem>>, vector<8x128xf32>
      %c0_53 = arith.constant 0 : index
      %c0_54 = arith.constant 0 : index
      %157 = vector.load %arg6[%c0_53, %c0_54] : memref<8x128xf32, #tpu.memory_space<vmem>>, vector<8x128xf32>
      tpu.vector_store %arg6[%c0_53, %c0_54], %156 {strides = array<i32>} : memref<8x128xf32, #tpu.memory_space<vmem>>, vector<8x128xf32>,
    } else {
    }
    %c0 = arith.constant 0 : index
    %c0_1 = arith.constant 0 : index
    %3 = vector.load %arg6[%c0, %c0_1] : memref<8x128xf32, #tpu.memory_space<vmem>>, vector<8x128xf32>
    %4 = arith.truncf %3 : vector<8x128xf32> to vector<8x128xbf16>
    %c0_2 = arith.constant 0 : index
    %c0_3 = arith.constant 0 : index
    %c0_4 = arith.constant 0 : index
    %5 = vector.load %arg2[%c0_2, %c0_3, %c0_4] : memref<1x128x384xbf16, #tpu.memory_space<vmem>>, vector<1x128x384xbf16>
    %6 = vector.shape_cast %5 : vector<1x128x384xbf16> to vector<128x384xbf16>
    %cst = arith.constant dense<0.000000e+00> : vector<8x384xf32>
    %7 = tpu.matmul %4, %6, %cst {dimension_numbers = #tpu.dot_dimension_numbers<[1], [0], [0], [1], [0, 0, 1, 1], [], []>} : vector<8x128xbf16>, vector<128x384xbf16>, vector<8x384xf32> -> vector<8x384xf32>
    %8 = vector.extract_strided_slice %7 {offsets = [0, 0], sizes = [8, 128], strides = [1, 1]} : vector<8x384xf32> to vector<8x128xf32>
    %9 = vector.extract_strided_slice %7 {offsets = [0, 128], sizes = [8, 128], strides = [1, 1]} : vector<8x384xf32> to vector<8x128xf32>
    %10 = vector.extract_strided_slice %7 {offsets = [0, 256], sizes = [8, 128], strides = [1, 1]} : vector<8x384xf32> to vector<8x128xf32>
    %11 = vector.extract_strided_slice %8 {offsets = [0, 0], sizes = [8, 32], strides = [1, 1]} : vector<8x128xf32> to vector<8x32xf32>
    %12 = arith.truncf %11 : vector<8x32xf32> to vector<8x32xbf16>
    %13 = vector.extract_strided_slice %9 {offsets = [0, 0], sizes = [8, 32], strides = [1, 1]} : vector<8x128xf32> to vector<8x32xf32>
    %14 = arith.truncf %13 : vector<8x32xf32> to vector<8x32xbf16>
    %15 = vector.extract_strided_slice %10 {offsets = [0, 0], sizes = [8, 32], strides = [1, 1]} : vector<8x128xf32> to vector<8x32xf32>
    %16 = arith.truncf %15 : vector<8x32xf32> to vector<8x32xbf16>
    %cst_5 = arith.constant dense<0.000000e+00> : vector<8x8xf32>
    %17 = tpu.matmul %12, %14, %cst_5 {dimension_numbers = #tpu.dot_dimension_numbers<[1], [1], [0], [0], [0, 0, 1, 0], [], []>} : vector<8x32xbf16>, vector<8x32xbf16>, vector<8x8xf32> -> vector<8x8xf32>
    %cst_6 = arith.constant dense<0xFF800000> : vector<8xf32>
    %18 = vector.multi_reduction <maximumf>, %17, %cst_6 [1] : vector<8x8xf32> to vector<8xf32>
    %19 = vector.shape_cast %18 : vector<8xf32> to vector<8x1xf32>
    %20 = vector.broadcast %19 : vector<8x1xf32> to vector<8x8xf32>
    %21 = arith.subf %17, %20 : vector<8x8xf32>
    %22 = math.exp %21 : vector<8x8xf32>
    %cst_7 = arith.constant dense<0.000000e+00> : vector<8xf32>
    %23 = vector.multi_reduction <add>, %22, %cst_7 [1] : vector<8x8xf32> to vector<8xf32>
    %24 = vector.shape_cast %23 : vector<8xf32> to vector<8x1xf32>
    %25 = tpu.reciprocal %24 {approx = true} : vector<8x1xf32> -> vector<8x1xf32>
    %26 = vector.broadcast %25 : vector<8x1xf32> to vector<8x8xf32>
    %27 = arith.mulf %22, %26 : vector<8x8xf32>
    %28 = arith.truncf %27 : vector<8x8xf32> to vector<8x8xbf16>
    %cst_8 = arith.constant dense<0.000000e+00> : vector<8x32xf32>
    %29 = tpu.matmul %28, %16, %cst_8 {dimension_numbers = #tpu.dot_dimension_numbers<[1], [0], [0], [1], [0, 0, 1, 1], [], []>} : vector<8x8xbf16>, vector<8x32xbf16>, vector<8x32xf32> -> vector<8x32xf32>
    %c0_9 = arith.constant 0 : index
    %c0_10 = arith.constant 0 : index
    %30 = vector.load %arg7[%c0_9, %c0_10] : memref<8x128xf32, #tpu.memory_space<vmem>>, vector<8x32xf32>
    tpu.vector_store %arg7[%c0_9, %c0_10], %29 {strides = array<i32>} : memref<8x128xf32, #tpu.memory_space<vmem>>, vector<8x32xf32>,
    %31 = vector.extract_strided_slice %8 {offsets = [0, 32], sizes = [8, 32], strides = [1, 1]} : vector<8x128xf32> to vector<8x32xf32>
    %32 = arith.truncf %31 : vector<8x32xf32> to vector<8x32xbf16>
    %33 = vector.extract_strided_slice %9 {offsets = [0, 32], sizes = [8, 32], strides = [1, 1]} : vector<8x128xf32> to vector<8x32xf32>
    %34 = arith.truncf %33 : vector<8x32xf32> to vector<8x32xbf16>
    %35 = vector.extract_strided_slice %10 {offsets = [0, 32], sizes = [8, 32], strides = [1, 1]} : vector<8x128xf32> to vector<8x32xf32>
    %36 = arith.truncf %35 : vector<8x32xf32> to vector<8x32xbf16>
    %cst_11 = arith.constant dense<0.000000e+00> : vector<8x8xf32>
    %37 = tpu.matmul %32, %34, %cst_11 {dimension_numbers = #tpu.dot_dimension_numbers<[1], [1], [0], [0], [0, 0, 1, 0], [], []>} : vector<8x32xbf16>, vector<8x32xbf16>, vector<8x8xf32> -> vector<8x8xf32>
    %cst_12 = arith.constant dense<0xFF800000> : vector<8xf32>
    %38 = vector.multi_reduction <maximumf>, %37, %cst_12 [1] : vector<8x8xf32> to vector<8xf32>
    %39 = vector.shape_cast %38 : vector<8xf32> to vector<8x1xf32>
    %40 = vector.broadcast %39 : vector<8x1xf32> to vector<8x8xf32>
    %41 = arith.subf %37, %40 : vector<8x8xf32>
    %42 = math.exp %41 : vector<8x8xf32>
    %cst_13 = arith.constant dense<0.000000e+00> : vector<8xf32>
    %43 = vector.multi_reduction <add>, %42, %cst_13 [1] : vector<8x8xf32> to vector<8xf32>
    %44 = vector.shape_cast %43 : vector<8xf32> to vector<8x1xf32>
    %45 = tpu.reciprocal %44 {approx = true} : vector<8x1xf32> -> vector<8x1xf32>
    %46 = vector.broadcast %45 : vector<8x1xf32> to vector<8x8xf32>
    %47 = arith.mulf %42, %46 : vector<8x8xf32>
    %48 = arith.truncf %47 : vector<8x8xf32> to vector<8x8xbf16>
    %cst_14 = arith.constant dense<0.000000e+00> : vector<8x32xf32>
    %49 = tpu.matmul %48, %36, %cst_14 {dimension_numbers = #tpu.dot_dimension_numbers<[1], [0], [0], [1], [0, 0, 1, 1], [], []>} : vector<8x8xbf16>, vector<8x32xbf16>, vector<8x32xf32> -> vector<8x32xf32>
    %c0_15 = arith.constant 0 : index
    %c32 = arith.constant 32 : index
    %50 = vector.load %arg7[%c0_15, %c32] : memref<8x128xf32, #tpu.memory_space<vmem>>, vector<8x32xf32>
    tpu.vector_store %arg7[%c0_15, %c32], %49 {strides = array<i32>} : memref<8x128xf32, #tpu.memory_space<vmem>>, vector<8x32xf32>,
    %51 = vector.extract_strided_slice %8 {offsets = [0, 64], sizes = [8, 32], strides = [1, 1]} : vector<8x128xf32> to vector<8x32xf32>
    %52 = arith.truncf %51 : vector<8x32xf32> to vector<8x32xbf16>
    %53 = vector.extract_strided_slice %9 {offsets = [0, 64], sizes = [8, 32], strides = [1, 1]} : vector<8x128xf32> to vector<8x32xf32>
    %54 = arith.truncf %53 : vector<8x32xf32> to vector<8x32xbf16>
    %55 = vector.extract_strided_slice %10 {offsets = [0, 64], sizes = [8, 32], strides = [1, 1]} : vector<8x128xf32> to vector<8x32xf32>
    %56 = arith.truncf %55 : vector<8x32xf32> to vector<8x32xbf16>
    %cst_16 = arith.constant dense<0.000000e+00> : vector<8x8xf32>
    %57 = tpu.matmul %52, %54, %cst_16 {dimension_numbers = #tpu.dot_dimension_numbers<[1], [1], [0], [0], [0, 0, 1, 0], [], []>} : vector<8x32xbf16>, vector<8x32xbf16>, vector<8x8xf32> -> vector<8x8xf32>
    %cst_17 = arith.constant dense<0xFF800000> : vector<8xf32>
    %58 = vector.multi_reduction <maximumf>, %57, %cst_17 [1] : vector<8x8xf32> to vector<8xf32>
    %59 = vector.shape_cast %58 : vector<8xf32> to vector<8x1xf32>
    %60 = vector.broadcast %59 : vector<8x1xf32> to vector<8x8xf32>
    %61 = arith.subf %57, %60 : vector<8x8xf32>
    %62 = math.exp %61 : vector<8x8xf32>
    %cst_18 = arith.constant dense<0.000000e+00> : vector<8xf32>
    %63 = vector.multi_reduction <add>, %62, %cst_18 [1] : vector<8x8xf32> to vector<8xf32>
    %64 = vector.shape_cast %63 : vector<8xf32> to vector<8x1xf32>
    %65 = tpu.reciprocal %64 {approx = true} : vector<8x1xf32> -> vector<8x1xf32>
    %66 = vector.broadcast %65 : vector<8x1xf32> to vector<8x8xf32>
    %67 = arith.mulf %62, %66 : vector<8x8xf32>
    %68 = arith.truncf %67 : vector<8x8xf32> to vector<8x8xbf16>
    %cst_19 = arith.constant dense<0.000000e+00> : vector<8x32xf32>
    %69 = tpu.matmul %68, %56, %cst_19 {dimension_numbers = #tpu.dot_dimension_numbers<[1], [0], [0], [1], [0, 0, 1, 1], [], []>} : vector<8x8xbf16>, vector<8x32xbf16>, vector<8x32xf32> -> vector<8x32xf32>
    %c0_20 = arith.constant 0 : index
    %c64 = arith.constant 64 : index
    %70 = vector.load %arg7[%c0_20, %c64] : memref<8x128xf32, #tpu.memory_space<vmem>>, vector<8x32xf32>
    tpu.vector_store %arg7[%c0_20, %c64], %69 {strides = array<i32>} : memref<8x128xf32, #tpu.memory_space<vmem>>, vector<8x32xf32>,
    %71 = vector.extract_strided_slice %8 {offsets = [0, 96], sizes = [8, 32], strides = [1, 1]} : vector<8x128xf32> to vector<8x32xf32>
    %72 = arith.truncf %71 : vector<8x32xf32> to vector<8x32xbf16>
    %73 = vector.extract_strided_slice %9 {offsets = [0, 96], sizes = [8, 32], strides = [1, 1]} : vector<8x128xf32> to vector<8x32xf32>
    %74 = arith.truncf %73 : vector<8x32xf32> to vector<8x32xbf16>
    %75 = vector.extract_strided_slice %10 {offsets = [0, 96], sizes = [8, 32], strides = [1, 1]} : vector<8x128xf32> to vector<8x32xf32>
    %76 = arith.truncf %75 : vector<8x32xf32> to vector<8x32xbf16>
    %cst_21 = arith.constant dense<0.000000e+00> : vector<8x8xf32>
    %77 = tpu.matmul %72, %74, %cst_21 {dimension_numbers = #tpu.dot_dimension_numbers<[1], [1], [0], [0], [0, 0, 1, 0], [], []>} : vector<8x32xbf16>, vector<8x32xbf16>, vector<8x8xf32> -> vector<8x8xf32>
    %cst_22 = arith.constant dense<0xFF800000> : vector<8xf32>
    %78 = vector.multi_reduction <maximumf>, %77, %cst_22 [1] : vector<8x8xf32> to vector<8xf32>
    %79 = vector.shape_cast %78 : vector<8xf32> to vector<8x1xf32>
    %80 = vector.broadcast %79 : vector<8x1xf32> to vector<8x8xf32>
    %81 = arith.subf %77, %80 : vector<8x8xf32>
    %82 = math.exp %81 : vector<8x8xf32>
    %cst_23 = arith.constant dense<0.000000e+00> : vector<8xf32>
    %83 = vector.multi_reduction <add>, %82, %cst_23 [1] : vector<8x8xf32> to vector<8xf32>
    %84 = vector.shape_cast %83 : vector<8xf32> to vector<8x1xf32>
    %85 = tpu.reciprocal %84 {approx = true} : vector<8x1xf32> -> vector<8x1xf32>
    %86 = vector.broadcast %85 : vector<8x1xf32> to vector<8x8xf32>
    %87 = arith.mulf %82, %86 : vector<8x8xf32>
    %88 = arith.truncf %87 : vector<8x8xf32> to vector<8x8xbf16>
    %cst_24 = arith.constant dense<0.000000e+00> : vector<8x32xf32>
    %89 = tpu.matmul %88, %76, %cst_24 {dimension_numbers = #tpu.dot_dimension_numbers<[1], [0], [0], [1], [0, 0, 1, 1], [], []>} : vector<8x8xbf16>, vector<8x32xbf16>, vector<8x32xf32> -> vector<8x32xf32>
    %c0_25 = arith.constant 0 : index
    %c96 = arith.constant 96 : index
    %90 = vector.load %arg7[%c0_25, %c96] : memref<8x128xf32, #tpu.memory_space<vmem>>, vector<8x32xf32>
    tpu.vector_store %arg7[%c0_25, %c96], %89 {strides = array<i32>} : memref<8x128xf32, #tpu.memory_space<vmem>>, vector<8x32xf32>,
    %c0_26 = arith.constant 0 : index
    %c0_27 = arith.constant 0 : index
    %91 = vector.load %arg7[%c0_26, %c0_27] : memref<8x128xf32, #tpu.memory_space<vmem>>, vector<8x128xf32>
    %92 = arith.truncf %91 : vector<8x128xf32> to vector<8x128xbf16>
    %c0_28 = arith.constant 0 : index
    %c0_29 = arith.constant 0 : index
    %c0_30 = arith.constant 0 : index
    %93 = vector.load %arg3[%c0_28, %c0_29, %c0_30] : memref<1x128x128xbf16, #tpu.memory_space<vmem>>, vector<1x128x128xbf16>
    %94 = vector.shape_cast %93 : vector<1x128x128xbf16> to vector<128x128xbf16>
    %cst_31 = arith.constant dense<0.000000e+00> : vector<8x128xf32>
    %95 = tpu.matmul %92, %94, %cst_31 {dimension_numbers = #tpu.dot_dimension_numbers<[1], [0], [0], [1], [0, 0, 1, 1], [], []>} : vector<8x128xbf16>, vector<128x128xbf16>, vector<8x128xf32> -> vector<8x128xf32>
    %c0_32 = arith.constant 0 : index
    %c0_33 = arith.constant 0 : index
    %c0_34 = arith.constant 0 : index
    %96 = vector.load %arg5[%c0_32, %c0_33, %c0_34] : memref<1x8x128xf32, #tpu.memory_space<vmem>>, vector<1x8x128xf32>
    %97 = vector.shape_cast %96 : vector<1x8x128xf32> to vector<8x128xf32>
    %98 = vector.extract_strided_slice %97 {offsets = [0, 0], sizes = [1, 128], strides = [1, 1]} : vector<8x128xf32> to vector<1x128xf32>
    %99 = vector.extract_strided_slice %97 {offsets = [1, 0], sizes = [1, 128], strides = [1, 1]} : vector<8x128xf32> to vector<1x128xf32>
    %100 = vector.extract_strided_slice %97 {offsets = [2, 0], sizes = [1, 128], strides = [1, 1]} : vector<8x128xf32> to vector<1x128xf32>
    %101 = vector.extract_strided_slice %97 {offsets = [3, 0], sizes = [1, 128], strides = [1, 1]} : vector<8x128xf32> to vector<1x128xf32>
    %102 = vector.extract_strided_slice %97 {offsets = [4, 0], sizes = [1, 128], strides = [1, 1]} : vector<8x128xf32> to vector<1x128xf32>
    %103 = arith.addf %95, %3 : vector<8x128xf32>
    %cst_35 = arith.constant dense<0.000000e+00> : vector<8xf32>
    %104 = vector.multi_reduction <add>, %103, %cst_35 [1] : vector<8x128xf32> to vector<8xf32>
    %105 = vector.shape_cast %104 : vector<8xf32> to vector<8x1xf32>
    %cst_36 = arith.constant 1.280000e+02 : f32
    %106 = vector.broadcast %cst_36 : f32 to vector<8x1xf32>
    %107 = arith.divf %105, %106 : vector<8x1xf32>
    %108 = vector.broadcast %107 : vector<8x1xf32> to vector<8x128xf32>
    %109 = arith.subf %103, %108 : vector<8x128xf32>
    %110 = arith.mulf %109, %109 : vector<8x128xf32>
    %cst_37 = arith.constant dense<0.000000e+00> : vector<8xf32>
    %111 = vector.multi_reduction <add>, %110, %cst_37 [1] : vector<8x128xf32> to vector<8xf32>
    %112 = vector.shape_cast %111 : vector<8xf32> to vector<8x1xf32>
    %cst_38 = arith.constant 1.280000e+02 : f32
    %113 = vector.broadcast %cst_38 : f32 to vector<8x1xf32>
    %114 = arith.divf %112, %113 : vector<8x1xf32>
    %115 = vector.broadcast %107 : vector<8x1xf32> to vector<8x128xf32>
    %116 = arith.subf %103, %115 : vector<8x128xf32>
    %cst_39 = arith.constant 9.99999974E-6 : f32
    %117 = vector.broadcast %cst_39 : f32 to vector<8x1xf32>
    %118 = arith.addf %114, %117 : vector<8x1xf32>
    %119 = math.rsqrt %118 : vector<8x1xf32>
    %120 = vector.broadcast %119 : vector<8x1xf32> to vector<8x128xf32>
    %121 = arith.mulf %116, %120 : vector<8x128xf32>
    %122 = vector.broadcast %98 : vector<1x128xf32> to vector<8x128xf32>
    %123 = arith.mulf %121, %122 : vector<8x128xf32>
    %124 = vector.broadcast %99 : vector<1x128xf32> to vector<8x128xf32>
    %125 = arith.addf %123, %124 : vector<8x128xf32>
    %126 = arith.truncf %125 : vector<8x128xf32> to vector<8x128xbf16>
    %c0_40 = arith.constant 0 : index
    %c0_41 = arith.constant 0 : index
    %c0_42 = arith.constant 0 : index
    %127 = vector.load %arg4[%c0_40, %c0_41, %c0_42] : memref<1x128x128xbf16, #tpu.memory_space<vmem>>, vector<1x128x128xbf16>
    %128 = vector.shape_cast %127 : vector<1x128x128xbf16> to vector<128x128xbf16>
    %cst_43 = arith.constant dense<0.000000e+00> : vector<8x128xf32>
    %129 = tpu.matmul %126, %128, %cst_43 {dimension_numbers = #tpu.dot_dimension_numbers<[1], [0], [0], [1], [0, 0, 1, 1], [], []>} : vector<8x128xbf16>, vector<128x128xbf16>, vector<8x128xf32> -> vector<8x128xf32>
    %130 = vector.broadcast %100 : vector<1x128xf32> to vector<8x128xf32>
    %131 = arith.addf %129, %130 : vector<8x128xf32>
    %132 = arith.addf %131, %125 : vector<8x128xf32>
    %cst_44 = arith.constant dense<0.000000e+00> : vector<8xf32>
    %133 = vector.multi_reduction <add>, %132, %cst_44 [1] : vector<8x128xf32> to vector<8xf32>
    %134 = vector.shape_cast %133 : vector<8xf32> to vector<8x1xf32>
    %cst_45 = arith.constant 1.280000e+02 : f32
    %135 = vector.broadcast %cst_45 : f32 to vector<8x1xf32>
    %136 = arith.divf %134, %135 : vector<8x1xf32>
    %137 = vector.broadcast %136 : vector<8x1xf32> to vector<8x128xf32>
    %138 = arith.subf %132, %137 : vector<8x128xf32>
    %139 = arith.mulf %138, %138 : vector<8x128xf32>
    %cst_46 = arith.constant dense<0.000000e+00> : vector<8xf32>
    %140 = vector.multi_reduction <add>, %139, %cst_46 [1] : vector<8x128xf32> to vector<8xf32>
    %141 = vector.shape_cast %140 : vector<8xf32> to vector<8x1xf32>
    %cst_47 = arith.constant 1.280000e+02 : f32
    %142 = vector.broadcast %cst_47 : f32 to vector<8x1xf32>
    %143 = arith.divf %141, %142 : vector<8x1xf32>
    %144 = vector.broadcast %136 : vector<8x1xf32> to vector<8x128xf32>
    %145 = arith.subf %132, %144 : vector<8x128xf32>
    %cst_48 = arith.constant 9.99999974E-6 : f32
    %146 = vector.broadcast %cst_48 : f32 to vector<8x1xf32>
    %147 = arith.addf %143, %146 : vector<8x1xf32>
    %148 = math.rsqrt %147 : vector<8x1xf32>
    %149 = vector.broadcast %148 : vector<8x1xf32> to vector<8x128xf32>
    %150 = arith.mulf %145, %149 : vector<8x128xf32>
    %151 = vector.broadcast %101 : vector<1x128xf32> to vector<8x128xf32>
    %152 = arith.mulf %150, %151 : vector<8x128xf32>
    %153 = vector.broadcast %102 : vector<1x128xf32> to vector<8x128xf32>
    %154 = arith.addf %152, %153 : vector<8x128xf32>
    %c0_49 = arith.constant 0 : index
    %c0_50 = arith.constant 0 : index
    %155 = vector.load %arg6[%c0_49, %c0_50] : memref<8x128xf32, #tpu.memory_space<vmem>>, vector<8x128xf32>
    tpu.vector_store %arg6[%c0_49, %c0_50], %154 {strides = array<i32>} : memref<8x128xf32, #tpu.memory_space<vmem>>, vector<8x128xf32>,
    return
  }
  func.func @transform_0(%arg0: i32) -> (i32, i32) {
    %c0_i32 = arith.constant 0 : i32
    %c0_i32_0 = arith.constant 0 : i32
    %c0_i32_1 = arith.constant 0 : i32
    return %c0_i32, %c0_i32_0 : i32, i32
  }
  func.func @transform_1(%arg0: i32) -> (i32, i32, i32) {
    %c0_i32 = arith.constant 0 : i32
    %c0_i32_0 = arith.constant 0 : i32
    %c0_i32_1 = arith.constant 0 : i32
    return %arg0, %c0_i32, %c0_i32_0 : i32, i32, i32
  }
  func.func @transform_2(%arg0: i32) -> (i32, i32, i32) {
    %c0_i32 = arith.constant 0 : i32
    %c0_i32_0 = arith.constant 0 : i32
    %c0_i32_1 = arith.constant 0 : i32
    return %arg0, %c0_i32, %c0_i32_0 : i32, i32, i32
  }
  func.func @transform_3(%arg0: i32) -> (i32, i32, i32) {
    %c0_i32 = arith.constant 0 : i32
    %c0_i32_0 = arith.constant 0 : i32
    %c0_i32_1 = arith.constant 0 : i32
    return %arg0, %c0_i32, %c0_i32_0 : i32, i32, i32
  }
  func.func @transform_4(%arg0: i32) -> (i32, i32, i32) {
    %c0_i32 = arith.constant 0 : i32
    %c0_i32_0 = arith.constant 0 : i32
    %c0_i32_1 = arith.constant 0 : i32
    return %arg0, %c0_i32, %c0_i32_0 : i32, i32, i32
  }
  func.func @transform_5(%arg0: i32) -> (i32, i32) {
    %c0_i32 = arith.constant 0 : i32
    %c0_i32_0 = arith.constant 0 : i32
    %c0_i32_1 = arith.constant 0 : i32
    return %c0_i32, %c0_i32_0 : i32, i32
  }
}

</mosaic_0001>

<llo_original>
// kernel: encoder_forward.1
$region0: #{encoder_forward.1}
  #allocation0 [shape = 'u32[]', space=smem, size = 0x4, offset = 0x4, fixed_abs, tag = 'smem constant byte address 0x4 - core index']
  #allocation1 [shape = 'u32[144,128]{1,0:T(1,128)}', space=vmem, size = 0x12000, scoped, tag = 'internal scratch']
  #allocation2 [shape = 'f32[8,128]{1,0:T(8,128)}', space=vmem, size = 0x1000, scoped, tag = 'scratch operand']
  %s0 = inlined_call_operand.vmem [shape: f32[8,128], index: 0, kind: input, shape index: {}]
  %s1 = inlined_call_operand.hbm [shape: bf16[2,128,384], index: 1, kind: input, shape index: {}]
  %s2 = inlined_call_operand.hbm [shape: bf16[2,128,128], index: 2, kind: input, shape index: {}]
  %s3 = inlined_call_operand.hbm [shape: bf16[2,128,128], index: 3, kind: input, shape index: {}]
  %s4 = inlined_call_operand.vmem [shape: f32[2,8,128], index: 4, kind: input, shape index: {}]
  %s5 = inlined_call_operand.hbm [shape: f32[8,128], index: 5, kind: output, shape index: {}]
  %s6 = sld [smem:[#allocation0]]
  $region69: #{encoder_forward.1} parent=0
    _
  %s8 = ssub.s32 1, %s6
  %s9 = scalar_select 0, %s8, %s6
  $region1: #{encoder_forward.1} parent=0
    #allocation3 [shape = 'u8[196608]{0}', space=vmem, size = 0x30000, scoped, tag = 'input window, operand 1']
    #allocation4 [shape = 's32[2]{0}', space=sflag, size = 0x8, scoped, tag = 'scoped memory for encoder_forward.1']
    #allocation5 [shape = 's32[2]{0}', space=sflag, size = 0x8, scoped, tag = 'scoped memory for encoder_forward.1']
    #allocation6 [shape = 'u8[65536]{0}', space=vmem, size = 0x10000, scoped, tag = 'input window, operand 2']
    #allocation7 [shape = 's32[2]{0}', space=sflag, size = 0x8, scoped, tag = 'scoped memory for encoder_forward.1']
    #allocation8 [shape = 'u8[65536]{0}', space=vmem, size = 0x10000, scoped, tag = 'input window, operand 3']
    #allocation9 [shape = 'u8[4096]{0}', space=vmem, size = 0x1000, scoped, tag = 'output window, operand 0, single buffered']
    %10 = vsyncpa [#allocation4], 0
    %s11 = scalar_lea.sflag [#allocation4], 1
    %12 = vsyncpa %s11, 0
    %13 = vsyncpa [#allocation7], 0
    %s14 = scalar_lea.sflag [#allocation7], 1
    %15 = vsyncpa %s14, 0
    %16 = vsyncpa [#allocation5], 0
    loop: start=0, step=1, limit=4
    $region2: #{encoder_forward.1} parent=1 // loop_pre_header
      _
    $region3: #{encoder_forward.1} parent=1 // loop_header
      %s18 = sphi 0, %s22
      %p19 = scmp.ge.s32.totalorder %s18, 4
      %s26 = sphi 0, %s26
      %s28 = sphi 0, %s26
      %s29 = sphi 0, %s28
      %s43 = sphi 0, %s29
      %s49 = sphi 0, %s51
      %s52 = sphi 0, %s49
      %s53 = sphi 0, %s52
      %s69 = sphi 0, %s53
      %s75 = sphi 0, %s77
      %s78 = sphi 0, %s75
      %s79 = sphi 0, %s78
      %s95 = sphi 0, %s79
      %s101 = sphi 0, %s103
      %s104 = sphi 0, %s101
      %s105 = sphi 0, %s104
      %s121 = sphi 0, %s105
      %s127 = sphi 0, %s129
      %s130 = sphi 0, %s127
      %s131 = sphi 0, %s130
      %s147 = sphi 0, %s131
      %s151 = sphi 0, %s151
      %s153 = sphi 0, %s151
      %s154 = sphi 0, %s153
      %s168 = sphi 0, %s154
    $region4: #{encoder_forward.1} parent=1 // loop_header_branch
      %21 = sbr.rel (%p19) target = $region8
    $region5: #{encoder_forward.1} parent=1 // loop_body
      %s23 = ssub.s32 %s18, 1
      %s24 = ssub.s32 %s18, 2
      %s25 = sadd.s32 %s18, 1
      %s27 = sadd.s32 %s26, 1
      %p30 = scmp.eq.s32.totalorder %s18, 1
      %p31 = scmp.ne.s32.totalorder %s26, %s28
      %p32 = scmp.eq.s32.totalorder %s18, 0
      %p33 = por %p31, %p32
      %p34 = scmp.ne.s32.totalorder %s26, %s28
      %p35 = scmp.eq.s32.totalorder %s23, 1
      %p36 = por %p34, %p35
      %p37 = scmp.ne.s32.totalorder %s28, %s29
      %p38 = scmp.eq.s32.totalorder %s23, 0
      %p39 = por %p37, %p38
      %p40 = scmp.ne.s32.totalorder %s28, %s29
      %p41 = scmp.eq.s32.totalorder %s24, 1
      %p42 = por %p40, %p41
      %p44 = scmp.ne.s32.totalorder %s29, %s43
      %p45 = scmp.eq.s32.totalorder %s24, 0
      %p46 = por %p44, %p45
      %s47 = ssub.s32 %s18, %s25
      %p48 = scmp.eq.s32.totalorder %s47, 0
      %s50 = sadd.s32 %s49, 1
      %s51 = scalar_select %p48, %s49, %s50
      %p54 = pneg %p48
      %p55 = scmp.eq.s32.totalorder %s18, 1
      %p56 = por %p54, %p55
      %p57 = scmp.ne.s32.totalorder %s49, %s52
      %p58 = scmp.eq.s32.totalorder %s18, 0
      %p59 = por %p57, %p58
      %p60 = scmp.ne.s32.totalorder %s49, %s52
      %p61 = scmp.eq.s32.totalorder %s23, 1
      %p62 = por %p60, %p61
      %p63 = scmp.ne.s32.totalorder %s52, %s53
      %p64 = scmp.eq.s32.totalorder %s23, 0
      %p65 = por %p63, %p64
      %p66 = scmp.ne.s32.totalorder %s52, %s53
      %p67 = scmp.eq.s32.totalorder %s24, 1
      %p68 = por %p66, %p67
      %p70 = scmp.ne.s32.totalorder %s53, %s69
      %p71 = scmp.eq.s32.totalorder %s24, 0
      %p72 = por %p70, %p71
      %s73 = ssub.s32 %s18, %s25
      %p74 = scmp.eq.s32.totalorder %s73, 0
      %s76 = sadd.s32 %s75, 1
      %s77 = scalar_select %p74, %s75, %s76
      %p80 = pneg %p74
      %p81 = scmp.eq.s32.totalorder %s18, 1
      %p82 = por %p80, %p81
      %p83 = scmp.ne.s32.totalorder %s75, %s78
      %p84 = scmp.eq.s32.totalorder %s18, 0
      %p85 = por %p83, %p84
      %p86 = scmp.ne.s32.totalorder %s75, %s78
      %p87 = scmp.eq.s32.totalorder %s23, 1
      %p88 = por %p86, %p87
      %p89 = scmp.ne.s32.totalorder %s78, %s79
      %p90 = scmp.eq.s32.totalorder %s23, 0
      %p91 = por %p89, %p90
      %p92 = scmp.ne.s32.totalorder %s78, %s79
      %p93 = scmp.eq.s32.totalorder %s24, 1
      %p94 = por %p92, %p93
      %p96 = scmp.ne.s32.totalorder %s79, %s95
      %p97 = scmp.eq.s32.totalorder %s24, 0
      %p98 = por %p96, %p97
      %s99 = ssub.s32 %s18, %s25
      %p100 = scmp.eq.s32.totalorder %s99, 0
      %s102 = sadd.s32 %s101, 1
      %s103 = scalar_select %p100, %s101, %s102
      %p106 = pneg %p100
      %p107 = scmp.eq.s32.totalorder %s18, 1
      %p108 = por %p106, %p107
      %p109 = scmp.ne.s32.totalorder %s101, %s104
      %p110 = scmp.eq.s32.totalorder %s18, 0
      %p111 = por %p109, %p110
      %p112 = scmp.ne.s32.totalorder %s101, %s104
      %p113 = scmp.eq.s32.totalorder %s23, 1
      %p114 = por %p112, %p113
      %p115 = scmp.ne.s32.totalorder %s104, %s105
      %p116 = scmp.eq.s32.totalorder %s23, 0
      %p117 = por %p115, %p116
      %p118 = scmp.ne.s32.totalorder %s104, %s105
      %p119 = scmp.eq.s32.totalorder %s24, 1
      %p120 = por %p118, %p119
      %p122 = scmp.ne.s32.totalorder %s105, %s121
      %p123 = scmp.eq.s32.totalorder %s24, 0
      %p124 = por %p122, %p123
      %s125 = ssub.s32 %s18, %s25
      %p126 = scmp.eq.s32.totalorder %s125, 0
      %s128 = sadd.s32 %s127, 1
      %s129 = scalar_select %p126, %s127, %s128
      %p132 = pneg %p126
      %p133 = scmp.eq.s32.totalorder %s18, 1
      %p134 = por %p132, %p133
      %p135 = scmp.ne.s32.totalorder %s127, %s130
      %p136 = scmp.eq.s32.totalorder %s18, 0
      %p137 = por %p135, %p136
      %p138 = scmp.ne.s32.totalorder %s127, %s130
      %p139 = scmp.eq.s32.totalorder %s23, 1
      %p140 = por %p138, %p139
      %p141 = scmp.ne.s32.totalorder %s130, %s131
      %p142 = scmp.eq.s32.totalorder %s23, 0
      %p143 = por %p141, %p142
      %p144 = scmp.ne.s32.totalorder %s130, %s131
      %p145 = scmp.eq.s32.totalorder %s24, 1
      %p146 = por %p144, %p145
      %p148 = scmp.ne.s32.totalorder %s131, %s147
      %p149 = scmp.eq.s32.totalorder %s24, 0
      %p150 = por %p148, %p149
      %s152 = sadd.s32 %s151, 1
      %p155 = scmp.eq.s32.totalorder %s18, 1
      %p156 = scmp.ne.s32.totalorder %s151, %s153
      %p157 = scmp.eq.s32.totalorder %s18, 0
      %p158 = por %p156, %p157
      %p159 = scmp.ne.s32.totalorder %s151, %s153
      %p160 = scmp.eq.s32.totalorder %s23, 1
      %p161 = por %p159, %p160
      %p162 = scmp.ne.s32.totalorder %s153, %s154
      %p163 = scmp.eq.s32.totalorder %s23, 0
      %p164 = por %p162, %p163
      %p165 = scmp.ne.s32.totalorder %s153, %s154
      %p166 = scmp.eq.s32.totalorder %s24, 1
      %p167 = por %p165, %p166
      %p169 = scmp.ne.s32.totalorder %s154, %s168
      %p170 = scmp.eq.s32.totalorder %s24, 0
      %p171 = por %p169, %p170
      %p172 = scmp.le.s32.totalorder 1, %s18
      %p173 = scmp.lt.s32.totalorder %s18, 3
      %p174 = pnand %p172, %p173
      %p175 = pneg %p174
      // Predicated region
      $region9: #{encoder_forward.1} parent=5 // pred_check
        _
      $region10: #{encoder_forward.1} parent=5 // pred_check_branch
        %177 = sbr.rel (%p174) target = $region12
      $region11: #{encoder_forward.1} parent=5 // pred_region
        %s178 = ssub.s32 %s18, 1
        // Predicated region
        $region13: #{encoder_forward.1} parent=11 // pred_check
          %p179 = pneg %p39
        $region14: #{encoder_forward.1} parent=11 // pred_check_branch
          %181 = sbr.rel (%p179) target = $region16
        $region15: #{encoder_forward.1} parent=11 // pred_region
          _
        $region16: #{encoder_forward.1} parent=11 // pred_fallthru
          _
      $region12: #{encoder_forward.1} parent=5 // pred_fallthru
        _
      %p182 = scmp.lt.s32.totalorder %s18, 2
      // Predicated region
      $region17: #{encoder_forward.1} parent=5 // pred_check
        %p183 = pneg %p182
      $region18: #{encoder_forward.1} parent=5 // pred_check_branch
        %185 = sbr.rel (%p183) target = $region20
      $region19: #{encoder_forward.1} parent=5 // pred_region
        // Predicated region
        $region21: #{encoder_forward.1} parent=19 // pred_check
          %p186 = pneg %p59
        $region22: #{encoder_forward.1} parent=19 // pred_check_branch
          %188 = sbr.rel (%p186) target = $region24
        $region23: #{encoder_forward.1} parent=19 // pred_region
          %s189 = sand.u32 %s49, 1
          %s190 = scalar_lea.sflag [#allocation4], %s189
          %s191 = sand.u32 %s49, 1
          %s192 = smul.addr %s191, 192
          %s193 = scalar_lea.vmem [#allocation3], %s192
          %s195 = ssub.s32 3072, 3072
          %196 = vsyncadd %s190, %s195
          %s197 = smul.addr %s18, 48
          %s198 = smul.addr %s197, 64
          %s199 = scalar_lea.hbm %s1, %s198
          %s200 = sshll.u32 %s193, 4
          %s201 = int_to_ptr.vmem [resolvable:$true] %s200
          %206 = dma.hbm_to_vmem [thread:$0]  %s199, 3072, %s201, %s190, 192, 192, 12
        $region24: #{encoder_forward.1} parent=19 // pred_fallthru
          _
        // Predicated region
        $region25: #{encoder_forward.1} parent=19 // pred_check
          %p207 = pneg %p85
        $region26: #{encoder_forward.1} parent=19 // pred_check_branch
          %209 = sbr.rel (%p207) target = $region28
        $region27: #{encoder_forward.1} parent=19 // pred_region
          %s210 = sand.u32 %s18, 1
          %s211 = scalar_lea.sflag [#allocation7], %s210
          %s212 = sand.u32 %s75, 1
          %s213 = smul.addr %s212, 64
          %s214 = scalar_lea.vmem [#allocation6], %s213
          %s216 = ssub.s32 1024, 1024
          %217 = vsyncadd %s211, %s216
          %s218 = smul.addr %s18, 16
          %s219 = smul.addr %s218, 64
          %s220 = scalar_lea.hbm %s2, %s219
          %s221 = sshll.u32 %s214, 4
          %s222 = int_to_ptr.vmem [resolvable:$true] %s221
          %227 = dma.hbm_to_vmem [thread:$0]  %s220, 1024, %s222, %s211, 64, 64, 4
        $region28: #{encoder_forward.1} parent=19 // pred_fallthru
          _
        // Predicated region
        $region29: #{encoder_forward.1} parent=19 // pred_check
          %p228 = pneg %p111
        $region30: #{encoder_forward.1} parent=19 // pred_check_branch
          %230 = sbr.rel (%p228) target = $region32
        $region31: #{encoder_forward.1} parent=19 // pred_region
          %s231 = sand.u32 %s18, 1
          %s232 = scalar_lea.sflag [#allocation7], %s231
          %s233 = sand.u32 %s101, 1
          %s234 = smul.addr %s233, 64
          %s235 = scalar_lea.vmem [#allocation8], %s234
          %s237 = ssub.s32 1024, 1024
          %238 = vsyncadd %s232, %s237
          %s239 = smul.addr %s18, 16
          %s240 = smul.addr %s239, 64
          %s241 = scalar_lea.hbm %s3, %s240
          %s242 = sshll.u32 %s235, 4
          %s243 = int_to_ptr.vmem [resolvable:$true] %s242
          %248 = dma.hbm_to_vmem [thread:$0]  %s241, 1024, %s243, %s232, 64, 64, 4
        $region32: #{encoder_forward.1} parent=19 // pred_fallthru
          _
        // Predicated region
        $region33: #{encoder_forward.1} parent=19 // pred_check
          %p249 = pneg %p137
        $region34: #{encoder_forward.1} parent=19 // pred_check_branch
          %251 = sbr.rel (%p249) target = $region36
        $region35: #{encoder_forward.1} parent=19 // pred_region
          %p252 = scmp.lt.s32.totalorder %s18, 1
          %s253 = scalar_select %p252, %s18, 1
          %s254 = smul.addr %s253, 8
          %s255 = scalar_lea.vmem %s4, %s254
        $region36: #{encoder_forward.1} parent=19 // pred_fallthru
          _
      $region20: #{encoder_forward.1} parent=5 // pred_fallthru
        _
      %p256 = scmp.le.s32.totalorder 1, %s18
      %p257 = scmp.lt.s32.totalorder %s18, 3
      %p258 = pnand %p256, %p257
      %p259 = pneg %p258
      // Predicated region
      $region37: #{encoder_forward.1} parent=5 // pred_check
        _
      $region38: #{encoder_forward.1} parent=5 // pred_check_branch
        %261 = sbr.rel (%p258) target = $region40
      $region39: #{encoder_forward.1} parent=5 // pred_region
        %s262 = ssub.s32 %s18, 1
        %s263 = sand.u32 %s52, 1
        %s264 = scalar_lea.sflag [#allocation4], %s263
        %s265 = sand.u32 %s52, 1
        %s266 = smul.addr %s265, 192
        %s267 = scalar_lea.vmem [#allocation3], %s266
        // Predicated region
        $region41: #{encoder_forward.1} parent=39 // pred_check
          %p268 = pneg %p65
        $region42: #{encoder_forward.1} parent=39 // pred_check_branch
          %270 = sbr.rel (%p268) target = $region44
        $region43: #{encoder_forward.1} parent=39 // pred_region
          %271 = dma.done %s264, 3072
        $region44: #{encoder_forward.1} parent=39 // pred_fallthru
          _
        %s272 = sand.u32 %s23, 1
        %s273 = scalar_lea.sflag [#allocation7], %s272
        %s274 = sand.u32 %s78, 1
        %s275 = smul.addr %s274, 64
        %s276 = scalar_lea.vmem [#allocation6], %s275
        // Predicated region
        $region45: #{encoder_forward.1} parent=39 // pred_check
          %p277 = pneg %p91
        $region46: #{encoder_forward.1} parent=39 // pred_check_branch
          %279 = sbr.rel (%p277) target = $region48
        $region47: #{encoder_forward.1} parent=39 // pred_region
          %280 = dma.done %s273, 1024
        $region48: #{encoder_forward.1} parent=39 // pred_fallthru
          _
        %s281 = sand.u32 %s23, 1
        %s282 = scalar_lea.sflag [#allocation7], %s281
        %s283 = sand.u32 %s104, 1
        %s284 = smul.addr %s283, 64
        %s285 = scalar_lea.vmem [#allocation8], %s284
        // Predicated region
        $region49: #{encoder_forward.1} parent=39 // pred_check
          %p286 = pneg %p117
        $region50: #{encoder_forward.1} parent=39 // pred_check_branch
          %288 = sbr.rel (%p286) target = $region52
        $region51: #{encoder_forward.1} parent=39 // pred_region
          %289 = dma.done %s282, 1024
        $region52: #{encoder_forward.1} parent=39 // pred_fallthru
          _
        %p290 = pneg %p39
        %p291 = pneg %p36
        %s292 = sand.u32 %s52, 1
        %s293 = scalar_lea.sflag [#allocation4], %s292
        %s294 = sand.u32 %s52, 1
        %s295 = smul.addr %s294, 192
        %s296 = scalar_lea.vmem [#allocation3], %s295
        %p297 = pneg %p65
        %p298 = pneg %p62
        %s299 = sand.u32 %s23, 1
        %s300 = scalar_lea.sflag [#allocation7], %s299
        %s301 = sand.u32 %s78, 1
        %s302 = smul.addr %s301, 64
        %s303 = scalar_lea.vmem [#allocation6], %s302
        %p304 = pneg %p91
        %p305 = pneg %p88
        %s306 = sand.u32 %s23, 1
        %s307 = scalar_lea.sflag [#allocation7], %s306
        %s308 = sand.u32 %s104, 1
        %s309 = smul.addr %s308, 64
        %s310 = scalar_lea.vmem [#allocation8], %s309
        %p311 = pneg %p117
        %p312 = pneg %p114
        %p313 = scmp.lt.s32.totalorder %s23, 1
        %s314 = scalar_select %p313, %s23, 1
        %s315 = smul.addr %s314, 8
        %s316 = scalar_lea.vmem %s4, %s315
        %p317 = pneg %p143
        %p318 = pneg %p140
        %p319 = pneg %p164
        %p320 = pneg %p161
        %p321 = scmp.lt.s32.totalorder %s23, 1
        %s322 = scalar_select %p321, %s23, 1
        %s323 = smul.addr %s322, 8
        %s324 = scalar_lea.vmem %s4, %s323
        %p326 = scmp.eq.s32.totalorder %s23, 0
        // Predicated region
        $region53: #{encoder_forward.1} parent=39 // pred_check
          %p327 = pneg %p326
        $region54: #{encoder_forward.1} parent=39 // pred_check_branch
          %329 = sbr.rel (%p327) target = $region56
        $region55: #{encoder_forward.1} parent=39 // pred_region
          %v330 = vld [vmem:[%s0] sm:$0xff]
          %331 = vst [vmem:[#allocation9] sm:$0xff] %v330
        $region56: #{encoder_forward.1} parent=39 // pred_fallthru
          _
        %v332 = vld [vmem:[#allocation9] sm:$0xff]
        %v333 = vpack.c.bf16 %v332, %v332
        %v334 = vld [vmem:[%s267] sm:$0xff]
        %v335 = vld [vmem:[%s267 + $0x8] sm:$0xf]
        %v336 = vld [vmem:[%s267 + $0xc] sm:$0xff]
        %v337 = vld [vmem:[%s267 + $0x14] sm:$0xf]
        %v338 = vld [vmem:[%s267 + $0x18] sm:$0xff]
        %v339 = vld [vmem:[%s267 + $0x20] sm:$0xf]
        %v340 = vld [vmem:[%s267 + $0x24] sm:$0xff]
        %v341 = vld [vmem:[%s267 + $0x2c] sm:$0xf]
        %v342 = vld [vmem:[%s267 + $0x30] sm:$0xff]
        %v343 = vld [vmem:[%s267 + $0x38] sm:$0xf]
        %v344 = vld [vmem:[%s267 + $0x3c] sm:$0xff]
        %v345 = vld [vmem:[%s267 + $0x44] sm:$0xf]
        %v346 = vld [vmem:[%s267 + $0x48] sm:$0xff]
        %v347 = vld [vmem:[%s267 + $0x50] sm:$0xf]
        %v348 = vld [vmem:[%s267 + $0x54] sm:$0xff]
        %v349 = vld [vmem:[%s267 + $0x5c] sm:$0xf]
        %v350 = vld [vmem:[%s267 + $0x60] sm:$0xff]
        %v351 = vld [vmem:[%s267 + $0x68] sm:$0xf]
        %v352 = vld [vmem:[%s267 + $0x6c] sm:$0xff]
        %v353 = vld [vmem:[%s267 + $0x74] sm:$0xf]
        %v354 = vld [vmem:[%s267 + $0x78] sm:$0xff]
        %v355 = vld [vmem:[%s267 + $0x80] sm:$0xf]
        %v356 = vld [vmem:[%s267 + $0x84] sm:$0xff]
        %v357 = vld [vmem:[%s267 + $0x8c] sm:$0xf]
        %v358 = vld [vmem:[%s267 + $0x90] sm:$0xff]
        %v359 = vld [vmem:[%s267 + $0x98] sm:$0xf]
        %v360 = vld [vmem:[%s267 + $0x9c] sm:$0xff]
        %v361 = vld [vmem:[%s267 + $0xa4] sm:$0xf]
        %v362 = vld [vmem:[%s267 + $0xa8] sm:$0xff]
        %v363 = vld [vmem:[%s267 + $0xb0] sm:$0xf]
        %v364 = vld [vmem:[%s267 + $0xb4] sm:$0xff]
        %v365 = vld [vmem:[%s267 + $0xbc] sm:$0xf]
        %v398 = vunpack.c.l.b16 %v334
        %v399 = vunpack.c.h.b16 %v334
        %v400 = vunpack.c.l.b16 %v335
        %v401 = vunpack.c.l.b16 %v336
        %v402 = vunpack.c.h.b16 %v336
        %v403 = vunpack.c.l.b16 %v337
        %v404 = vunpack.c.l.b16 %v338
        %v405 = vunpack.c.h.b16 %v338
        %v406 = vunpack.c.l.b16 %v339
        %v407 = vunpack.c.l.b16 %v340
        %v408 = vunpack.c.h.b16 %v340
        %v409 = vunpack.c.l.b16 %v341
        %v410 = vunpack.c.l.b16 %v342
        %v411 = vunpack.c.h.b16 %v342
        %v412 = vunpack.c.l.b16 %v343
        %v413 = vunpack.c.l.b16 %v344
        %v414 = vunpack.c.h.b16 %v344
        %v415 = vunpack.c.l.b16 %v345
        %v416 = vunpack.c.l.b16 %v346
        %v417 = vunpack.c.h.b16 %v346
        %v418 = vunpack.c.l.b16 %v347
        %v419 = vunpack.c.l.b16 %v348
        %v420 = vunpack.c.h.b16 %v348
        %v421 = vunpack.c.l.b16 %v349
        %v422 = vunpack.c.l.b16 %v350
        %v423 = vunpack.c.h.b16 %v350
        %v424 = vunpack.c.l.b16 %v351
        %v425 = vunpack.c.l.b16 %v352
        %v426 = vunpack.c.h.b16 %v352
        %v427 = vunpack.c.l.b16 %v353
        %v428 = vunpack.c.l.b16 %v354
        %v429 = vunpack.c.h.b16 %v354
        %v430 = vunpack.c.l.b16 %v355
        %v431 = vunpack.c.l.b16 %v356
        %v432 = vunpack.c.h.b16 %v356
        %v433 = vunpack.c.l.b16 %v357
        %v434 = vunpack.c.l.b16 %v358
        %v435 = vunpack.c.h.b16 %v358
        %v436 = vunpack.c.l.b16 %v359
        %v437 = vunpack.c.l.b16 %v360
        %v438 = vunpack.c.h.b16 %v360
        %v439 = vunpack.c.l.b16 %v361
        %v440 = vunpack.c.l.b16 %v362
        %v441 = vunpack.c.h.b16 %v362
        %v442 = vunpack.c.l.b16 %v363
        %v443 = vunpack.c.l.b16 %v364
        %v444 = vunpack.c.h.b16 %v364
        %v445 = vunpack.c.l.b16 %v365
        %v446 = vpack.c.b16 %v401, %v398
        %v447 = vpack.c.b16 %v402, %v399
        %v448 = vpack.c.b16 %v403, %v400
        %v449 = vpack.c.b16 %v407, %v404
        %v450 = vpack.c.b16 %v408, %v405
        %v451 = vpack.c.b16 %v409, %v406
        %v452 = vpack.c.b16 %v413, %v410
        %v453 = vpack.c.b16 %v414, %v411
        %v454 = vpack.c.b16 %v415, %v412
        %v455 = vpack.c.b16 %v419, %v416
        %v456 = vpack.c.b16 %v420, %v417
        %v457 = vpack.c.b16 %v421, %v418
        %v458 = vpack.c.b16 %v425, %v422
        %v459 = vpack.c.b16 %v426, %v423
        %v460 = vpack.c.b16 %v427, %v424
        %v461 = vpack.c.b16 %v431, %v428
        %v462 = vpack.c.b16 %v432, %v429
        %v463 = vpack.c.b16 %v433, %v430
        %v464 = vpack.c.b16 %v437, %v434
        %v465 = vpack.c.b16 %v438, %v435
        %v466 = vpack.c.b16 %v439, %v436
        %v467 = vpack.c.b16 %v443, %v440
        %v468 = vpack.c.b16 %v444, %v441
        %v469 = vpack.c.b16 %v445, %v442
        %494 = vmatprep.subr.bf16.mxu0 %v447
        %495 = vmatpush1.bf16.msra.mxu0 %v446
        %496 = vmatprep.subr.bf16.mxu0 %v450
        %497 = vmatpush1.bf16.msra.mxu0 %v449
        %498 = vmatprep.subr.bf16.mxu0 %v453
        %499 = vmatpush1.bf16.msra.mxu0 %v452
        %500 = vmatprep.subr.bf16.mxu0 %v456
        %501 = vmatpush1.bf16.msra.mxu0 %v455
        %502 = vmatprep.subr.bf16.mxu0 %v459
        %503 = vmatpush1.bf16.msra.mxu0 %v458
        %504 = vmatprep.subr.bf16.mxu0 %v462
        %505 = vmatpush1.bf16.msra.mxu0 %v461
        %506 = vmatprep.subr.bf16.mxu0 %v465
        %507 = vmatpush1.bf16.msra.mxu0 %v464
        %508 = vmatprep.subr.bf16.mxu0 %v468
        %509 = vmatpush1.bf16.msra.mxu0 %v467
        %510 = vmatprep.subr.bf16.mxu0 0
        %511 = vmatpush1.bf16.msra.mxu0 0
        %512 = vmatprep.subr.bf16.mxu0 0
        %513 = vmatpush1.bf16.msra.mxu0 0
        %514 = vmatprep.subr.bf16.mxu0 0
        %515 = vmatpush1.bf16.msra.mxu0 0
        %516 = vmatprep.subr.bf16.mxu0 0
        %517 = vmatpush1.bf16.msra.mxu0 0
        %518 = vmatprep.subr.bf16.mxu0 0
        %519 = vmatpush1.bf16.msra.mxu0 0
        %520 = vmatprep.subr.bf16.mxu0 0
        %521 = vmatpush1.bf16.msra.mxu0 0
        %522 = vmatprep.subr.bf16.mxu0 0
        %523 = vmatpush1.bf16.msra.mxu0 0
        %524 = vmatprep.subr.bf16.mxu0 0
        %525 = vmatpush1.bf16.msra.mxu0 0
        %526 = vmatprep.mubr.bf16.mxu0 0
        %527 = vmatmul.mubr.bf16.gmra.mrb[0].mxu0 %v333
        %v528 = vpop.f32.mrb[0].mxu0
        %v529 = vadd.f32 0.0, %v528
        %v530 = vpop.f32.mrb[0].mxu0
        %v531 = vadd.f32 0.0, %v530
        %v532 = vpop.f32.mrb[0].mxu0
        %v533 = vpop.f32.mrb[0].mxu0
        %534 = vdwg.mxu0
        %535 = vmatprep.subr.bf16.mxu0 0
        %536 = vmatpush1.bf16.msra.mxu0 %v448
        %537 = vmatprep.subr.bf16.mxu0 0
        %538 = vmatpush1.bf16.msra.mxu0 %v451
        %539 = vmatprep.subr.bf16.mxu0 0
        %540 = vmatpush1.bf16.msra.mxu0 %v454
        %541 = vmatprep.subr.bf16.mxu0 0
        %542 = vmatpush1.bf16.msra.mxu0 %v457
        %543 = vmatprep.subr.bf16.mxu0 0
        %544 = vmatpush1.bf16.msra.mxu0 %v460
        %545 = vmatprep.subr.bf16.mxu0 0
        %546 = vmatpush1.bf16.msra.mxu0 %v463
        %547 = vmatprep.subr.bf16.mxu0 0
        %548 = vmatpush1.bf16.msra.mxu0 %v466
        %549 = vmatprep.subr.bf16.mxu0 0
        %550 = vmatpush1.bf16.msra.mxu0 %v469
        %551 = vmatprep.subr.bf16.mxu0 0
        %552 = vmatpush1.bf16.msra.mxu0 0
        %553 = vmatprep.subr.bf16.mxu0 0
        %554 = vmatpush1.bf16.msra.mxu0 0
        %555 = vmatprep.subr.bf16.mxu0 0
        %556 = vmatpush1.bf16.msra.mxu0 0
        %557 = vmatprep.subr.bf16.mxu0 0
        %558 = vmatpush1.bf16.msra.mxu0 0
        %559 = vmatprep.subr.bf16.mxu0 0
        %560 = vmatpush1.bf16.msra.mxu0 0
        %561 = vmatprep.subr.bf16.mxu0 0
        %562 = vmatpush1.bf16.msra.mxu0 0
        %563 = vmatprep.subr.bf16.mxu0 0
        %564 = vmatpush1.bf16.msra.mxu0 0
        %565 = vmatprep.subr.bf16.mxu0 0
        %566 = vmatpush1.bf16.msra.mxu0 0
        %567 = vmatprep.mubr.bf16.mxu0 0
        %568 = vmatmul.mubr.bf16.gmra.mrb[0].mxu0 %v333
        %v569 = vpop.f32.mrb[0].mxu0
        %v570 = vadd.f32 0.0, %v569
        %v571 = vpop.f32.mrb[0].mxu0
        %v572 = vpop.f32.mrb[0].mxu0
        %v573 = vpop.f32.mrb[0].mxu0
        %574 = vdwg.mxu0
        %v575 = vpack.c.bf16 %v529, %v529
        %v576 = vpack.c.bf16 %v531, %v531
        %v577 = vpack.c.bf16 %v570, %v570
        %vm578 = vcmask 261120
        %v580 = vsel %vm578, %v575, 0
        %v583 = vsel %vm578, %v576, 0
        %585 = vmatprep.subr.bf16.mxu0 0
        %586 = vmatpush1.bf16.xpose.msra.mxu0 %v583
        %587 = vmatprep.subr.bf16.mxu0 0
        %588 = vmatpush1.bf16.xpose.msra.mxu0 0
        %589 = vmatprep.subr.bf16.mxu0 0
        %590 = vmatpush1.bf16.xpose.msra.mxu0 0
        %591 = vmatprep.subr.bf16.mxu0 0
        %592 = vmatpush1.bf16.xpose.msra.mxu0 0
        %593 = vmatprep.subr.bf16.mxu0 0
        %594 = vmatpush1.bf16.xpose.msra.mxu0 0
        %595 = vmatprep.subr.bf16.mxu0 0
        %596 = vmatpush1.bf16.xpose.msra.mxu0 0
        %597 = vmatprep.subr.bf16.mxu0 0
        %598 = vmatpush1.bf16.xpose.msra.mxu0 0
        %599 = vmatprep.subr.bf16.mxu0 0
        %600 = vmatpush1.bf16.xpose.msra.mxu0 0
        %601 = vmatprep.subr.bf16.mxu0 0
        %602 = vmatpush1.bf16.xpose.msra.mxu0 0
        %603 = vmatprep.subr.bf16.mxu0 0
        %604 = vmatpush1.bf16.xpose.msra.mxu0 0
        %605 = vmatprep.subr.bf16.mxu0 0
        %606 = vmatpush1.bf16.xpose.msra.mxu0 0
        %607 = vmatprep.subr.bf16.mxu0 0
        %608 = vmatpush1.bf16.xpose.msra.mxu0 0
        %609 = vmatprep.subr.bf16.mxu0 0
        %610 = vmatpush1.bf16.xpose.msra.mxu0 0
        %611 = vmatprep.subr.bf16.mxu0 0
        %612 = vmatpush1.bf16.xpose.msra.mxu0 0
        %613 = vmatprep.subr.bf16.mxu0 0
        %614 = vmatpush1.bf16.xpose.msra.mxu0 0
        %615 = vmatprep.subr.bf16.mxu0 0
        %616 = vmatpush1.bf16.xpose.msra.mxu0 0
        %617 = vmatprep.mubr.bf16.mxu0 0
        %618 = vmatmul.mubr.bf16.gmra.mrb[0].mxu0 %v580
        %v619 = vpop.f32.mrb[0].mxu0
        %v620 = vadd.f32 0.0, %v619
        %v621 = vpop.f32.mrb[0].mxu0
        %v622 = vpop.f32.mrb[0].mxu0
        %v623 = vpop.f32.mrb[0].mxu0
        %624 = vdwg.mxu0
        %vm625 = vcmask 64512
        %v626 = vsel %vm625, %v620, -inf
        %627 = vmax.xlane.f32.xlu0 %v626
        %v628 = vpop.xlane.xlu0 %627
        %v629 = vsub.f32 %v620, %v628
        %v630 = vmul.f32 %v629, 1.442695
        %v631 = vpow.pop %v630
        %v632 = vsel %vm625, %v631, 0.0
        %633 = vadd.xlane.f32.xlu0 %v632
        %v634 = vpop.xlane.xlu0 %633
        %v635 = vrcp.pop %v634
        %v636 = vmul.f32 %v631, %v635
        %v637 = vpack.c.bf16 %v636, %v636
        %v639 = vsel %vm625, %v637, 0
        %vm641 = vcmask 1043456
        %v643 = vsel %vm641, %v577, 0
        %645 = vmatprep.subr.bf16.mxu0 0
        %646 = vmatpush1.bf16.msra.mxu0 %v643
        %647 = vmatprep.subr.bf16.mxu0 0
        %648 = vmatpush1.bf16.msra.mxu0 0
        %649 = vmatprep.subr.bf16.mxu0 0
        %650 = vmatpush1.bf16.msra.mxu0 0
        %651 = vmatprep.subr.bf16.mxu0 0
        %652 = vmatpush1.bf16.msra.mxu0 0
        %653 = vmatprep.subr.bf16.mxu0 0
        %654 = vmatpush1.bf16.msra.mxu0 0
        %655 = vmatprep.subr.bf16.mxu0 0
        %656 = vmatpush1.bf16.msra.mxu0 0
        %657 = vmatprep.subr.bf16.mxu0 0
        %658 = vmatpush1.bf16.msra.mxu0 0
        %659 = vmatprep.subr.bf16.mxu0 0
        %660 = vmatpush1.bf16.msra.mxu0 0
        %661 = vmatprep.subr.bf16.mxu0 0
        %662 = vmatpush1.bf16.msra.mxu0 0
        %663 = vmatprep.subr.bf16.mxu0 0
        %664 = vmatpush1.bf16.msra.mxu0 0
        %665 = vmatprep.subr.bf16.mxu0 0
        %666 = vmatpush1.bf16.msra.mxu0 0
        %667 = vmatprep.subr.bf16.mxu0 0
        %668 = vmatpush1.bf16.msra.mxu0 0
        %669 = vmatprep.subr.bf16.mxu0 0
        %670 = vmatpush1.bf16.msra.mxu0 0
        %671 = vmatprep.subr.bf16.mxu0 0
        %672 = vmatpush1.bf16.msra.mxu0 0
        %673 = vmatprep.subr.bf16.mxu0 0
        %674 = vmatpush1.bf16.msra.mxu0 0
        %675 = vmatprep.subr.bf16.mxu0 0
        %676 = vmatpush1.bf16.msra.mxu0 0
        %677 = vmatprep.mubr.bf16.mxu0 0
        %678 = vmatmul.mubr.bf16.gmra.mrb[0].mxu0 %v639
        %v679 = vpop.f32.mrb[0].mxu0
        %v680 = vadd.f32 0.0, %v679
        %v681 = vpop.f32.mrb[0].mxu0
        %v682 = vpop.f32.mrb[0].mxu0
        %v683 = vpop.f32.mrb[0].mxu0
        %684 = vdwg.mxu0
        %685 = vst.msk [vmem:[#allocation2] sm:$0xff] %vm578, %v680
        %687 = vrot.lane.b32.xlu0 %v575, 96
        %v688 = vpop.permute.xlu0 %687
        %690 = vrot.lane.b32.xlu0 %v576, 96
        %v691 = vpop.permute.xlu0 %690
        %v693 = vsel %vm578, %v688, 0
        %v696 = vsel %vm578, %v691, 0
        %698 = vmatprep.subr.bf16.mxu0 0
        %699 = vmatpush1.bf16.xpose.msra.mxu0 %v696
        %700 = vmatprep.subr.bf16.mxu0 0
        %701 = vmatpush1.bf16.xpose.msra.mxu0 0
        %702 = vmatprep.subr.bf16.mxu0 0
        %703 = vmatpush1.bf16.xpose.msra.mxu0 0
        %704 = vmatprep.subr.bf16.mxu0 0
        %705 = vmatpush1.bf16.xpose.msra.mxu0 0
        %706 = vmatprep.subr.bf16.mxu0 0
        %707 = vmatpush1.bf16.xpose.msra.mxu0 0
        %708 = vmatprep.subr.bf16.mxu0 0
        %709 = vmatpush1.bf16.xpose.msra.mxu0 0
        %710 = vmatprep.subr.bf16.mxu0 0
        %711 = vmatpush1.bf16.xpose.msra.mxu0 0
        %712 = vmatprep.subr.bf16.mxu0 0
        %713 = vmatpush1.bf16.xpose.msra.mxu0 0
        %714 = vmatprep.subr.bf16.mxu0 0
        %715 = vmatpush1.bf16.xpose.msra.mxu0 0
        %716 = vmatprep.subr.bf16.mxu0 0
        %717 = vmatpush1.bf16.xpose.msra.mxu0 0
        %718 = vmatprep.subr.bf16.mxu0 0
        %719 = vmatpush1.bf16.xpose.msra.mxu0 0
        %720 = vmatprep.subr.bf16.mxu0 0
        %721 = vmatpush1.bf16.xpose.msra.mxu0 0
        %722 = vmatprep.subr.bf16.mxu0 0
        %723 = vmatpush1.bf16.xpose.msra.mxu0 0
        %724 = vmatprep.subr.bf16.mxu0 0
        %725 = vmatpush1.bf16.xpose.msra.mxu0 0
        %726 = vmatprep.subr.bf16.mxu0 0
        %727 = vmatpush1.bf16.xpose.msra.mxu0 0
        %728 = vmatprep.subr.bf16.mxu0 0
        %729 = vmatpush1.bf16.xpose.msra.mxu0 0
        %730 = vmatprep.mubr.bf16.mxu0 0
        %731 = vmatmul.mubr.bf16.gmra.mrb[0].mxu0 %v693
        %v732 = vpop.f32.mrb[0].mxu0
        %v733 = vadd.f32 0.0, %v732
        %v734 = vpop.f32.mrb[0].mxu0
        %v735 = vpop.f32.mrb[0].mxu0
        %v736 = vpop.f32.mrb[0].mxu0
        %737 = vdwg.mxu0
        %v738 = vsel %vm625, %v733, -inf
        %739 = vmax.xlane.f32.xlu0 %v738
        %v740 = vpop.xlane.xlu0 %739
        %v741 = vsub.f32 %v733, %v740
        %v742 = vmul.f32 %v741, 1.442695
        %v743 = vpow.pop %v742
        %v744 = vsel %vm625, %v743, 0.0
        %745 = vadd.xlane.f32.xlu0 %v744
        %v746 = vpop.xlane.xlu0 %745
        %v747 = vrcp.pop %v746
        %v748 = vmul.f32 %v743, %v747
        %v749 = vpack.c.bf16 %v748, %v748
        %751 = vrot.lane.b32.xlu0 %v577, 96
        %v752 = vpop.permute.xlu0 %751
        %v754 = vsel %vm625, %v749, 0
        %v757 = vsel %vm641, %v752, 0
        %759 = vmatprep.subr.bf16.mxu0 0
        %760 = vmatpush1.bf16.msra.mxu0 %v757
        %761 = vmatprep.subr.bf16.mxu0 0
        %762 = vmatpush1.bf16.msra.mxu0 0
        %763 = vmatprep.subr.bf16.mxu0 0
        %764 = vmatpush1.bf16.msra.mxu0 0
        %765 = vmatprep.subr.bf16.mxu0 0
        %766 = vmatpush1.bf16.msra.mxu0 0
        %767 = vmatprep.subr.bf16.mxu0 0
        %768 = vmatpush1.bf16.msra.mxu0 0
        %769 = vmatprep.subr.bf16.mxu0 0
        %770 = vmatpush1.bf16.msra.mxu0 0
        %771 = vmatprep.subr.bf16.mxu0 0
        %772 = vmatpush1.bf16.msra.mxu0 0
        %773 = vmatprep.subr.bf16.mxu0 0
        %774 = vmatpush1.bf16.msra.mxu0 0
        %775 = vmatprep.subr.bf16.mxu0 0
        %776 = vmatpush1.bf16.msra.mxu0 0
        %777 = vmatprep.subr.bf16.mxu0 0
        %778 = vmatpush1.bf16.msra.mxu0 0
        %779 = vmatprep.subr.bf16.mxu0 0
        %780 = vmatpush1.bf16.msra.mxu0 0
        %781 = vmatprep.subr.bf16.mxu0 0
        %782 = vmatpush1.bf16.msra.mxu0 0
        %783 = vmatprep.subr.bf16.mxu0 0
        %784 = vmatpush1.bf16.msra.mxu0 0
        %785 = vmatprep.subr.bf16.mxu0 0
        %786 = vmatpush1.bf16.msra.mxu0 0
        %787 = vmatprep.subr.bf16.mxu0 0
        %788 = vmatpush1.bf16.msra.mxu0 0
        %789 = vmatprep.subr.bf16.mxu0 0
        %790 = vmatpush1.bf16.msra.mxu0 0
        %791 = vmatprep.mubr.bf16.mxu0 0
        %792 = vmatmul.mubr.bf16.gmra.mrb[0].mxu0 %v754
        %v793 = vpop.f32.mrb[0].mxu0
        %v794 = vadd.f32 0.0, %v793
        %v795 = vpop.f32.mrb[0].mxu0
        %v796 = vpop.f32.mrb[0].mxu0
        %v797 = vpop.f32.mrb[0].mxu0
        %798 = vdwg.mxu0
        %800 = vrot.lane.b32.xlu0 %v794, 32
        %v801 = vpop.permute.xlu0 %800
        %vm803 = vcmask 523520
        %804 = vst.msk [vmem:[#allocation2] sm:$0xff] %vm803, %v801
        %805 = vrot.lane.b32.xlu0 %v575, 64
        %v806 = vpop.permute.xlu0 %805
        %807 = vrot.lane.b32.xlu0 %v576, 64
        %v808 = vpop.permute.xlu0 %807
        %v810 = vsel %vm578, %v806, 0
        %v813 = vsel %vm578, %v808, 0
        %815 = vmatprep.subr.bf16.mxu0 0
        %816 = vmatpush1.bf16.xpose.msra.mxu0 %v813
        %817 = vmatprep.subr.bf16.mxu0 0
        %818 = vmatpush1.bf16.xpose.msra.mxu0 0
        %819 = vmatprep.subr.bf16.mxu0 0
        %820 = vmatpush1.bf16.xpose.msra.mxu0 0
        %821 = vmatprep.subr.bf16.mxu0 0
        %822 = vmatpush1.bf16.xpose.msra.mxu0 0
        %823 = vmatprep.subr.bf16.mxu0 0
        %824 = vmatpush1.bf16.xpose.msra.mxu0 0
        %825 = vmatprep.subr.bf16.mxu0 0
        %826 = vmatpush1.bf16.xpose.msra.mxu0 0
        %827 = vmatprep.subr.bf16.mxu0 0
        %828 = vmatpush1.bf16.xpose.msra.mxu0 0
        %829 = vmatprep.subr.bf16.mxu0 0
        %830 = vmatpush1.bf16.xpose.msra.mxu0 0
        %831 = vmatprep.subr.bf16.mxu0 0
        %832 = vmatpush1.bf16.xpose.msra.mxu0 0
        %833 = vmatprep.subr.bf16.mxu0 0
        %834 = vmatpush1.bf16.xpose.msra.mxu0 0
        %835 = vmatprep.subr.bf16.mxu0 0
        %836 = vmatpush1.bf16.xpose.msra.mxu0 0
        %837 = vmatprep.subr.bf16.mxu0 0
        %838 = vmatpush1.bf16.xpose.msra.mxu0 0
        %839 = vmatprep.subr.bf16.mxu0 0
        %840 = vmatpush1.bf16.xpose.msra.mxu0 0
        %841 = vmatprep.subr.bf16.mxu0 0
        %842 = vmatpush1.bf16.xpose.msra.mxu0 0
        %843 = vmatprep.subr.bf16.mxu0 0
        %844 = vmatpush1.bf16.xpose.msra.mxu0 0
        %845 = vmatprep.subr.bf16.mxu0 0
        %846 = vmatpush1.bf16.xpose.msra.mxu0 0
        %847 = vmatprep.mubr.bf16.mxu0 0
        %848 = vmatmul.mubr.bf16.gmra.mrb[0].mxu0 %v810
        %v849 = vpop.f32.mrb[0].mxu0
        %v850 = vadd.f32 0.0, %v849
        %v851 = vpop.f32.mrb[0].mxu0
        %v852 = vpop.f32.mrb[0].mxu0
        %v853 = vpop.f32.mrb[0].mxu0
        %854 = vdwg.mxu0
        %v855 = vsel %vm625, %v850, -inf
        %856 = vmax.xlane.f32.xlu0 %v855
        %v857 = vpop.xlane.xlu0 %856
        %v858 = vsub.f32 %v850, %v857
        %v859 = vmul.f32 %v858, 1.442695
        %v860 = vpow.pop %v859
        %v861 = vsel %vm625, %v860, 0.0
        %862 = vadd.xlane.f32.xlu0 %v861
        %v863 = vpop.xlane.xlu0 %862
        %v864 = vrcp.pop %v863
        %v865 = vmul.f32 %v860, %v864
        %v866 = vpack.c.bf16 %v865, %v865
        %867 = vrot.lane.b32.xlu0 %v577, 64
        %v868 = vpop.permute.xlu0 %867
        %v870 = vsel %vm625, %v866, 0
        %v873 = vsel %vm641, %v868, 0
        %875 = vmatprep.subr.bf16.mxu0 0
        %876 = vmatpush1.bf16.msra.mxu0 %v873
        %877 = vmatprep.subr.bf16.mxu0 0
        %878 = vmatpush1.bf16.msra.mxu0 0
        %879 = vmatprep.subr.bf16.mxu0 0
        %880 = vmatpush1.bf16.msra.mxu0 0
        %881 = vmatprep.subr.bf16.mxu0 0
        %882 = vmatpush1.bf16.msra.mxu0 0
        %883 = vmatprep.subr.bf16.mxu0 0
        %884 = vmatpush1.bf16.msra.mxu0 0
        %885 = vmatprep.subr.bf16.mxu0 0
        %886 = vmatpush1.bf16.msra.mxu0 0
        %887 = vmatprep.subr.bf16.mxu0 0
        %888 = vmatpush1.bf16.msra.mxu0 0
        %889 = vmatprep.subr.bf16.mxu0 0
        %890 = vmatpush1.bf16.msra.mxu0 0
        %891 = vmatprep.subr.bf16.mxu0 0
        %892 = vmatpush1.bf16.msra.mxu0 0
        %893 = vmatprep.subr.bf16.mxu0 0
        %894 = vmatpush1.bf16.msra.mxu0 0
        %895 = vmatprep.subr.bf16.mxu0 0
        %896 = vmatpush1.bf16.msra.mxu0 0
        %897 = vmatprep.subr.bf16.mxu0 0
        %898 = vmatpush1.bf16.msra.mxu0 0
        %899 = vmatprep.subr.bf16.mxu0 0
        %900 = vmatpush1.bf16.msra.mxu0 0
        %901 = vmatprep.subr.bf16.mxu0 0
        %902 = vmatpush1.bf16.msra.mxu0 0
        %903 = vmatprep.subr.bf16.mxu0 0
        %904 = vmatpush1.bf16.msra.mxu0 0
        %905 = vmatprep.subr.bf16.mxu0 0
        %906 = vmatpush1.bf16.msra.mxu0 0
        %907 = vmatprep.mubr.bf16.mxu0 0
        %908 = vmatmul.mubr.bf16.gmra.mrb[0].mxu0 %v870
        %v909 = vpop.f32.mrb[0].mxu0
        %v910 = vadd.f32 0.0, %v909
        %v911 = vpop.f32.mrb[0].mxu0
        %v912 = vpop.f32.mrb[0].mxu0
        %v913 = vpop.f32.mrb[0].mxu0
        %914 = vdwg.mxu0
        %916 = vrot.lane.b32.xlu0 %v910, 64
        %v917 = vpop.permute.xlu0 %916
        %vm919 = vcmask 785920
        %920 = vst.msk [vmem:[#allocation2] sm:$0xff] %vm919, %v917
        %921 = vrot.lane.b32.xlu0 %v575, 32
        %v922 = vpop.permute.xlu0 %921
        %923 = vrot.lane.b32.xlu0 %v576, 32
        %v924 = vpop.permute.xlu0 %923
        %v926 = vsel %vm578, %v922, 0
        %v929 = vsel %vm578, %v924, 0
        %931 = vmatprep.subr.bf16.mxu0 0
        %932 = vmatpush1.bf16.xpose.msra.mxu0 %v929
        %933 = vmatprep.subr.bf16.mxu0 0
        %934 = vmatpush1.bf16.xpose.msra.mxu0 0
        %935 = vmatprep.subr.bf16.mxu0 0
        %936 = vmatpush1.bf16.xpose.msra.mxu0 0
        %937 = vmatprep.subr.bf16.mxu0 0
        %938 = vmatpush1.bf16.xpose.msra.mxu0 0
        %939 = vmatprep.subr.bf16.mxu0 0
        %940 = vmatpush1.bf16.xpose.msra.mxu0 0
        %941 = vmatprep.subr.bf16.mxu0 0
        %942 = vmatpush1.bf16.xpose.msra.mxu0 0
        %943 = vmatprep.subr.bf16.mxu0 0
        %944 = vmatpush1.bf16.xpose.msra.mxu0 0
        %945 = vmatprep.subr.bf16.mxu0 0
        %946 = vmatpush1.bf16.xpose.msra.mxu0 0
        %947 = vmatprep.subr.bf16.mxu0 0
        %948 = vmatpush1.bf16.xpose.msra.mxu0 0
        %949 = vmatprep.subr.bf16.mxu0 0
        %950 = vmatpush1.bf16.xpose.msra.mxu0 0
        %951 = vmatprep.subr.bf16.mxu0 0
        %952 = vmatpush1.bf16.xpose.msra.mxu0 0
        %953 = vmatprep.subr.bf16.mxu0 0
        %954 = vmatpush1.bf16.xpose.msra.mxu0 0
        %955 = vmatprep.subr.bf16.mxu0 0
        %956 = vmatpush1.bf16.xpose.msra.mxu0 0
        %957 = vmatprep.subr.bf16.mxu0 0
        %958 = vmatpush1.bf16.xpose.msra.mxu0 0
        %959 = vmatprep.subr.bf16.mxu0 0
        %960 = vmatpush1.bf16.xpose.msra.mxu0 0
        %961 = vmatprep.subr.bf16.mxu0 0
        %962 = vmatpush1.bf16.xpose.msra.mxu0 0
        %963 = vmatprep.mubr.bf16.mxu0 0
        %964 = vmatmul.mubr.bf16.gmra.mrb[0].mxu0 %v926
        %v965 = vpop.f32.mrb[0].mxu0
        %v966 = vadd.f32 0.0, %v965
        %v967 = vpop.f32.mrb[0].mxu0
        %v968 = vpop.f32.mrb[0].mxu0
        %v969 = vpop.f32.mrb[0].mxu0
        %970 = vdwg.mxu0
        %v971 = vsel %vm625, %v966, -inf
        %972 = vmax.xlane.f32.xlu0 %v971
        %v973 = vpop.xlane.xlu0 %972
        %v974 = vsub.f32 %v966, %v973
        %v975 = vmul.f32 %v974, 1.442695
        %v976 = vpow.pop %v975
        %v977 = vsel %vm625, %v976, 0.0
        %978 = vadd.xlane.f32.xlu0 %v977
        %v979 = vpop.xlane.xlu0 %978
        %v980 = vrcp.pop %v979
        %v981 = vmul.f32 %v976, %v980
        %v982 = vpack.c.bf16 %v981, %v981
        %983 = vrot.lane.b32.xlu0 %v577, 32
        %v984 = vpop.permute.xlu0 %983
        %v986 = vsel %vm625, %v982, 0
        %v989 = vsel %vm641, %v984, 0
        %991 = vmatprep.subr.bf16.mxu0 0
        %992 = vmatpush1.bf16.msra.mxu0 %v989
        %993 = vmatprep.subr.bf16.mxu0 0
        %994 = vmatpush1.bf16.msra.mxu0 0
        %995 = vmatprep.subr.bf16.mxu0 0
        %996 = vmatpush1.bf16.msra.mxu0 0
        %997 = vmatprep.subr.bf16.mxu0 0
        %998 = vmatpush1.bf16.msra.mxu0 0
        %999 = vmatprep.subr.bf16.mxu0 0
        %1000 = vmatpush1.bf16.msra.mxu0 0
        %1001 = vmatprep.subr.bf16.mxu0 0
        %1002 = vmatpush1.bf16.msra.mxu0 0
        %1003 = vmatprep.subr.bf16.mxu0 0
        %1004 = vmatpush1.bf16.msra.mxu0 0
        %1005 = vmatprep.subr.bf16.mxu0 0
        %1006 = vmatpush1.bf16.msra.mxu0 0
        %1007 = vmatprep.subr.bf16.mxu0 0
        %1008 = vmatpush1.bf16.msra.mxu0 0
        %1009 = vmatprep.subr.bf16.mxu0 0
        %1010 = vmatpush1.bf16.msra.mxu0 0
        %1011 = vmatprep.subr.bf16.mxu0 0
        %1012 = vmatpush1.bf16.msra.mxu0 0
        %1013 = vmatprep.subr.bf16.mxu0 0
        %1014 = vmatpush1.bf16.msra.mxu0 0
        %1015 = vmatprep.subr.bf16.mxu0 0
        %1016 = vmatpush1.bf16.msra.mxu0 0
        %1017 = vmatprep.subr.bf16.mxu0 0
        %1018 = vmatpush1.bf16.msra.mxu0 0
        %1019 = vmatprep.subr.bf16.mxu0 0
        %1020 = vmatpush1.bf16.msra.mxu0 0
        %1021 = vmatprep.subr.bf16.mxu0 0
        %1022 = vmatpush1.bf16.msra.mxu0 0
        %1023 = vmatprep.mubr.bf16.mxu0 0
        %1024 = vmatmul.mubr.bf16.gmra.mrb[0].mxu0 %v986
        %v1025 = vpop.f32.mrb[0].mxu0
        %v1026 = vadd.f32 0.0, %v1025
        %v1027 = vpop.f32.mrb[0].mxu0
        %v1028 = vpop.f32.mrb[0].mxu0
        %v1029 = vpop.f32.mrb[0].mxu0
        %1030 = vdwg.mxu0
        %1032 = vrot.lane.b32.xlu0 %v1026, 96
        %v1033 = vpop.permute.xlu0 %1032
        %vm1035 = vcmask 1048320
        %1036 = vst.msk [vmem:[#allocation2] sm:$0xff] %vm1035, %v1033
        %v1037 = vld [vmem:[#allocation2] sm:$0xff]
        %v1038 = vpack.c.bf16 %v1037, %v1037
        %v1039 = vld [vmem:[%s276] sm:$0xf]
        %v1040 = vld [vmem:[%s276 + $0x4] sm:$0xf]
        %v1041 = vld [vmem:[%s276 + $0x8] sm:$0xf]
        %v1042 = vld [vmem:[%s276 + $0xc] sm:$0xf]
        %v1043 = vld [vmem:[%s276 + $0x10] sm:$0xf]
        %v1044 = vld [vmem:[%s276 + $0x14] sm:$0xf]
        %v1045 = vld [vmem:[%s276 + $0x18] sm:$0xf]
        %v1046 = vld [vmem:[%s276 + $0x1c] sm:$0xf]
        %v1047 = vld [vmem:[%s276 + $0x20] sm:$0xf]
        %v1048 = vld [vmem:[%s276 + $0x24] sm:$0xf]
        %v1049 = vld [vmem:[%s276 + $0x28] sm:$0xf]
        %v1050 = vld [vmem:[%s276 + $0x2c] sm:$0xf]
        %v1051 = vld [vmem:[%s276 + $0x30] sm:$0xf]
        %v1052 = vld [vmem:[%s276 + $0x34] sm:$0xf]
        %v1053 = vld [vmem:[%s276 + $0x38] sm:$0xf]
        %v1054 = vld [vmem:[%s276 + $0x3c] sm:$0xf]
        %v1055 = vld [vmem:[%s324] sm:$0xff]
        %v1072 = vunpack.c.l.b16 %v1039
        %v1073 = vunpack.c.l.b16 %v1040
        %v1074 = vunpack.c.l.b16 %v1041
        %v1075 = vunpack.c.l.b16 %v1042
        %v1076 = vunpack.c.l.b16 %v1043
        %v1077 = vunpack.c.l.b16 %v1044
        %v1078 = vunpack.c.l.b16 %v1045
        %v1079 = vunpack.c.l.b16 %v1046
        %v1080 = vunpack.c.l.b16 %v1047
        %v1081 = vunpack.c.l.b16 %v1048
        %v1082 = vunpack.c.l.b16 %v1049
        %v1083 = vunpack.c.l.b16 %v1050
        %v1084 = vunpack.c.l.b16 %v1051
        %v1085 = vunpack.c.l.b16 %v1052
        %v1086 = vunpack.c.l.b16 %v1053
        %v1087 = vunpack.c.l.b16 %v1054
        %v1088 = vpack.c.b16 %v1073, %v1072
        %v1089 = vpack.c.b16 %v1075, %v1074
        %v1090 = vpack.c.b16 %v1077, %v1076
        %v1091 = vpack.c.b16 %v1079, %v1078
        %v1092 = vpack.c.b16 %v1081, %v1080
        %v1093 = vpack.c.b16 %v1083, %v1082
        %v1094 = vpack.c.b16 %v1085, %v1084
        %v1095 = vpack.c.b16 %v1087, %v1086
        %1104 = vmatprep.subr.bf16.mxu0 0
        %1105 = vmatpush1.bf16.msra.mxu0 %v1088
        %1106 = vmatprep.subr.bf16.mxu0 0
        %1107 = vmatpush1.bf16.msra.mxu0 %v1089
        %1108 = vmatprep.subr.bf16.mxu0 0
        %1109 = vmatpush1.bf16.msra.mxu0 %v1090
        %1110 = vmatprep.subr.bf16.mxu0 0
        %1111 = vmatpush1.bf16.msra.mxu0 %v1091
        %1112 = vmatprep.subr.bf16.mxu0 0
        %1113 = vmatpush1.bf16.msra.mxu0 %v1092
        %1114 = vmatprep.subr.bf16.mxu0 0
        %1115 = vmatpush1.bf16.msra.mxu0 %v1093
        %1116 = vmatprep.subr.bf16.mxu0 0
        %1117 = vmatpush1.bf16.msra.mxu0 %v1094
        %1118 = vmatprep.subr.bf16.mxu0 0
        %1119 = vmatpush1.bf16.msra.mxu0 %v1095
        %1120 = vmatprep.subr.bf16.mxu0 0
        %1121 = vmatpush1.bf16.msra.mxu0 0
        %1122 = vmatprep.subr.bf16.mxu0 0
        %1123 = vmatpush1.bf16.msra.mxu0 0
        %1124 = vmatprep.subr.bf16.mxu0 0
        %1125 = vmatpush1.bf16.msra.mxu0 0
        %1126 = vmatprep.subr.bf16.mxu0 0
        %1127 = vmatpush1.bf16.msra.mxu0 0
        %1128 = vmatprep.subr.bf16.mxu0 0
        %1129 = vmatpush1.bf16.msra.mxu0 0
        %1130 = vmatprep.subr.bf16.mxu0 0
        %1131 = vmatpush1.bf16.msra.mxu0 0
        %1132 = vmatprep.subr.bf16.mxu0 0
        %1133 = vmatpush1.bf16.msra.mxu0 0
        %1134 = vmatprep.subr.bf16.mxu0 0
        %1135 = vmatpush1.bf16.msra.mxu0 0
        %1136 = vmatprep.mubr.bf16.mxu0 0
        %1137 = vmatmul.mubr.bf16.gmra.mrb[0].mxu0 %v1038
        %v1138 = vpop.f32.mrb[0].mxu0
        %v1139 = vadd.f32 %v332, %v1138
        %v1140 = vpop.f32.mrb[0].mxu0
        %v1141 = vpop.f32.mrb[0].mxu0
        %v1142 = vpop.f32.mrb[0].mxu0
        %1143 = vdwg.mxu0
        %1144 = vadd.xlane.f32.xlu0 %v1139
        %v1145 = vpop.xlane.xlu0 %1144
        %v1146 = vrcp.pop 128.0
        %v1147 = vmul.f32 %v1145, %v1146
        %v1148 = vsub.f32 %v1139, %v1147
        %v1149 = vmul.f32 %v1148, %v1148
        %1150 = vadd.xlane.f32.xlu0 %v1149
        %v1151 = vpop.xlane.xlu0 %1150
        %v1152 = vmul.f32 %v1151, %v1146
        %v1153 = vadd.f32 %v1152, 1e-05
        %v1154 = vrsqrt.pop %v1153
        %v1155 = vmul.f32 %v1148, %v1154
        %v1156 = vlaneseq
        %v1157 = vshrl.u32 %v1156, 7
        %v1158 = vsub.s32 0, %v1157
        %v1159 = vrot.slane %v1055, %v1158
        %v1160 = vmul.f32 %v1155, %v1159
        %v1161 = vlaneseq
        %v1162 = vshrl.u32 %v1161, 7
        %v1163 = vsub.s32 1, %v1162
        %v1164 = vrot.slane %v1055, %v1163
        %v1165 = vadd.f32 %v1160, %v1164
        %v1166 = vpack.c.bf16 %v1165, %v1165
        %v1167 = vld [vmem:[%s285] sm:$0xf]
        %v1168 = vld [vmem:[%s285 + $0x4] sm:$0xf]
        %v1169 = vld [vmem:[%s285 + $0x8] sm:$0xf]
        %v1170 = vld [vmem:[%s285 + $0xc] sm:$0xf]
        %v1171 = vld [vmem:[%s285 + $0x10] sm:$0xf]
        %v1172 = vld [vmem:[%s285 + $0x14] sm:$0xf]
        %v1173 = vld [vmem:[%s285 + $0x18] sm:$0xf]
        %v1174 = vld [vmem:[%s285 + $0x1c] sm:$0xf]
        %v1175 = vld [vmem:[%s285 + $0x20] sm:$0xf]
        %v1176 = vld [vmem:[%s285 + $0x24] sm:$0xf]
        %v1177 = vld [vmem:[%s285 + $0x28] sm:$0xf]
        %v1178 = vld [vmem:[%s285 + $0x2c] sm:$0xf]
        %v1179 = vld [vmem:[%s285 + $0x30] sm:$0xf]
        %v1180 = vld [vmem:[%s285 + $0x34] sm:$0xf]
        %v1181 = vld [vmem:[%s285 + $0x38] sm:$0xf]
        %v1182 = vld [vmem:[%s285 + $0x3c] sm:$0xf]
        %v1183 = vlaneseq
        %v1184 = vshrl.u32 %v1183, 7
        %v1185 = vsub.s32 2, %v1184
        %v1186 = vrot.slane %v1055, %v1185
        %v1203 = vunpack.c.l.b16 %v1167
        %v1204 = vunpack.c.l.b16 %v1168
        %v1205 = vunpack.c.l.b16 %v1169
        %v1206 = vunpack.c.l.b16 %v1170
        %v1207 = vunpack.c.l.b16 %v1171
        %v1208 = vunpack.c.l.b16 %v1172
        %v1209 = vunpack.c.l.b16 %v1173
        %v1210 = vunpack.c.l.b16 %v1174
        %v1211 = vunpack.c.l.b16 %v1175
        %v1212 = vunpack.c.l.b16 %v1176
        %v1213 = vunpack.c.l.b16 %v1177
        %v1214 = vunpack.c.l.b16 %v1178
        %v1215 = vunpack.c.l.b16 %v1179
        %v1216 = vunpack.c.l.b16 %v1180
        %v1217 = vunpack.c.l.b16 %v1181
        %v1218 = vunpack.c.l.b16 %v1182
        %v1219 = vpack.c.b16 %v1204, %v1203
        %v1220 = vpack.c.b16 %v1206, %v1205
        %v1221 = vpack.c.b16 %v1208, %v1207
        %v1222 = vpack.c.b16 %v1210, %v1209
        %v1223 = vpack.c.b16 %v1212, %v1211
        %v1224 = vpack.c.b16 %v1214, %v1213
        %v1225 = vpack.c.b16 %v1216, %v1215
        %v1226 = vpack.c.b16 %v1218, %v1217
        %1235 = vmatprep.subr.bf16.mxu0 0
        %1236 = vmatpush1.bf16.msra.mxu0 %v1219
        %1237 = vmatprep.subr.bf16.mxu0 0
        %1238 = vmatpush1.bf16.msra.mxu0 %v1220
        %1239 = vmatprep.subr.bf16.mxu0 0
        %1240 = vmatpush1.bf16.msra.mxu0 %v1221
        %1241 = vmatprep.subr.bf16.mxu0 0
        %1242 = vmatpush1.bf16.msra.mxu0 %v1222
        %1243 = vmatprep.subr.bf16.mxu0 0
        %1244 = vmatpush1.bf16.msra.mxu0 %v1223
        %1245 = vmatprep.subr.bf16.mxu0 0
        %1246 = vmatpush1.bf16.msra.mxu0 %v1224
        %1247 = vmatprep.subr.bf16.mxu0 0
        %1248 = vmatpush1.bf16.msra.mxu0 %v1225
        %1249 = vmatprep.subr.bf16.mxu0 0
        %1250 = vmatpush1.bf16.msra.mxu0 %v1226
        %1251 = vmatprep.subr.bf16.mxu0 0
        %1252 = vmatpush1.bf16.msra.mxu0 0
        %1253 = vmatprep.subr.bf16.mxu0 0
        %1254 = vmatpush1.bf16.msra.mxu0 0
        %1255 = vmatprep.subr.bf16.mxu0 0
        %1256 = vmatpush1.bf16.msra.mxu0 0
        %1257 = vmatprep.subr.bf16.mxu0 0
        %1258 = vmatpush1.bf16.msra.mxu0 0
        %1259 = vmatprep.subr.bf16.mxu0 0
        %1260 = vmatpush1.bf16.msra.mxu0 0
        %1261 = vmatprep.subr.bf16.mxu0 0
        %1262 = vmatpush1.bf16.msra.mxu0 0
        %1263 = vmatprep.subr.bf16.mxu0 0
        %1264 = vmatpush1.bf16.msra.mxu0 0
        %1265 = vmatprep.subr.bf16.mxu0 0
        %1266 = vmatpush1.bf16.msra.mxu0 0
        %1267 = vmatprep.mubr.bf16.mxu0 0
        %1268 = vmatmul.mubr.bf16.gmra.mrb[0].mxu0 %v1166
        %v1269 = vpop.f32.mrb[0].mxu0
        %v1270 = vadd.f32 %v1186, %v1269
        %v1271 = vpop.f32.mrb[0].mxu0
        %v1272 = vpop.f32.mrb[0].mxu0
        %v1273 = vpop.f32.mrb[0].mxu0
        %1274 = vdwg.mxu0
        %v1275 = vadd.f32 %v1270, %v1165
        %1276 = vadd.xlane.f32.xlu0 %v1275
        %v1277 = vpop.xlane.xlu0 %1276
        %v1278 = vmul.f32 %v1277, %v1146
        %v1279 = vsub.f32 %v1275, %v1278
        %v1280 = vmul.f32 %v1279, %v1279
        %1281 = vadd.xlane.f32.xlu0 %v1280
        %v1282 = vpop.xlane.xlu0 %1281
        %v1283 = vmul.f32 %v1282, %v1146
        %v1284 = vadd.f32 %v1283, 1e-05
        %v1285 = vrsqrt.pop %v1284
        %v1286 = vmul.f32 %v1279, %v1285
        %v1287 = vlaneseq
        %v1288 = vshrl.u32 %v1287, 7
        %v1289 = vsub.s32 3, %v1288
        %v1290 = vrot.slane %v1055, %v1289
        %v1291 = vmul.f32 %v1286, %v1290
        %v1292 = vlaneseq
        %v1293 = vshrl.u32 %v1292, 7
        %v1294 = vsub.s32 4, %v1293
        %v1295 = vrot.slane %v1055, %v1294
        %v1296 = vadd.f32 %v1291, %v1295
        %1297 = vst [vmem:[#allocation9] sm:$0xff] %v1296
        // Predicated region
        $region57: #{encoder_forward.1} parent=39 // pred_check
          %p1298 = pneg %p161
        $region58: #{encoder_forward.1} parent=39 // pred_check_branch
          %1300 = sbr.rel (%p1298) target = $region60
        $region59: #{encoder_forward.1} parent=39 // pred_region
          %s1302 = ssub.s32 128, 128
          %1303 = vsyncadd [#allocation5], %s1302
          %s1305 = sshll.u32 [#allocation9], 4
          %s1306 = int_to_ptr.vmem [resolvable:$true] %s1305
          %1308 = dma.vmem_to_hbm [thread:$0]  %s1306, 128, %s5, [#allocation5]
        $region60: #{encoder_forward.1} parent=39 // pred_fallthru
          _
        // Predicated region
        $region61: #{encoder_forward.1} parent=39 // pred_check
          %p1309 = pneg %p161
        $region62: #{encoder_forward.1} parent=39 // pred_check_branch
          %1311 = sbr.rel (%p1309) target = $region64
        $region63: #{encoder_forward.1} parent=39 // pred_region
          %1312 = dma.done [#allocation5], 128
        $region64: #{encoder_forward.1} parent=39 // pred_fallthru
          _
      $region40: #{encoder_forward.1} parent=5 // pred_fallthru
        _
      %p1313 = scmp.le.s32.totalorder 2, %s18
      // Predicated region
      $region65: #{encoder_forward.1} parent=5 // pred_check
        %p1314 = pneg %p1313
      $region66: #{encoder_forward.1} parent=5 // pred_check_branch
        %1316 = sbr.rel (%p1314) target = $region68
      $region67: #{encoder_forward.1} parent=5 // pred_region
        %s1317 = ssub.s32 %s18, 2
      $region68: #{encoder_forward.1} parent=5 // pred_fallthru
        _
    $region6: #{encoder_forward.1} parent=1 // loop_footer
      %s22 = sadd.s32 1, %s18
    $region7: #{encoder_forward.1} parent=1 // loop_footer_branch
      %17 = sbr.rel target = $region3
    $region8: #{encoder_forward.1} parent=1 // loop_exit
      _
    %1318 = vsyncpa [#allocation4], 1
    %s1319 = scalar_lea.sflag [#allocation4], 1
    %1320 = vsyncpa %s1319, 1
    %1321 = vsyncpa [#allocation7], 1
    %s1322 = scalar_lea.sflag [#allocation7], 1
    %1323 = vsyncpa %s1322, 1
    %1324 = vsyncpa [#allocation5], 1
    %s1325 = scalar_lea.sflag [#allocation5], 1
    %1326 = vsyncpa %s1325, 1

</llo_original>
